<compile_context>
chip_gen: v7x
topology: tpu7x:2x2x1
jax: 0.10.0
libtpu: 0.0.40
codegen_flags: <defaults>
</compile_context>

<pallas_src>
import functools
import math

import jax
import jax.numpy as jnp
from jax import lax
from jax.experimental import pallas as pl
from jax.experimental.pallas import tpu as pltpu

HEAD_COUNT = 4
MODEL_SIZE = 32
FF_SIZE = 64
HEAD_DIM = MODEL_SIZE // HEAD_COUNT
BN_EPS = 1e-5
NEG_INF = -1e30


def encoder_layer_kernel(N, L,
                         h_ref, bias_ref, keep_ref,
                         wqkv_ref, wo_ref,
                         g1_ref, b1_ref,
                         w1_ref, c1_ref, w2_ref, c2_ref,
                         g2_ref, b2_ref,
                         out_ref):
    D, H, dh = MODEL_SIZE, HEAD_COUNT, HEAD_DIM

    h2 = h_ref[...]                                   # (N*L, D) f32
    h2_bf = h2.astype(jnp.bfloat16)

    # ---------------- fused QKV projection (single MXU slab matmul) ----------
    # (N*L, D) x (D, 3*H*dh) -> (N*L, 96), f32 accumulation.
    # Softmax scale is already folded into the Q columns of wqkv.
    qkv = jnp.dot(h2_bf, wqkv_ref[...], preferred_element_type=jnp.float32)

    bias = bias_ref[...]                              # (N, 1, L) f32, -1e30 on masked keys

    # ---------------- per-head attention --------------------------------------
    # Static lane slices + leading-dim reshapes only (no cross-lane transpose
    # relayouts); 3-D einsums with a leading batch dim (safe Mosaic form).
    head_outs = []
    for hh in range(H):
        q3 = qkv[:, hh * dh:(hh + 1) * dh].reshape(N, L, dh).astype(jnp.bfloat16)
        k3 = qkv[:, (H + hh) * dh:(H + hh + 1) * dh].reshape(N, L, dh).astype(jnp.bfloat16)
        v3 = qkv[:, (2 * H + hh) * dh:(2 * H + hh + 1) * dh].reshape(N, L, dh).astype(jnp.bfloat16)

        s = jnp.einsum('nqd,nkd->nqk', q3, k3,
                       preferred_element_type=jnp.float32)        # (N, L, L) f32
        s = s + bias                                               # masked keys -> -1e30

        m = jnp.max(s, axis=-1, keepdims=True)
        p = jnp.exp(s - m)                                         # f32 (EUP)
        rs = jnp.sum(p, axis=-1, keepdims=True)                    # (N, L, 1)

        o = jnp.einsum('nqk,nkd->nqd', p.astype(jnp.bfloat16), v3,
                       preferred_element_type=jnp.float32)         # (N, L, dh)
        o = o / rs                                                 # exact softmax norm
        head_outs.append(o.reshape(N * L, dh))

    # concat heads on lanes -> single (H*dh, D) output projection
    o2 = jnp.concatenate(head_outs, axis=-1)                       # (N*L, H*dh)
    att_out = jnp.dot(o2.astype(jnp.bfloat16), wo_ref[...],
                      preferred_element_type=jnp.float32)          # (N*L, D)

    # ---------------- BatchNorm1d #1 (training-mode, two-pass variance) ------
    x = h2 + att_out
    mu1 = jnp.mean(x, axis=0, keepdims=True)                       # (1, D)
    xc = x - mu1
    var1 = jnp.mean(xc * xc, axis=0, keepdims=True)
    att = xc * lax.rsqrt(var1 + BN_EPS) * g1_ref[...] + b1_ref[...]

    # ---------------- feed-forward: relu(ff1) -> ff2 ---------------------------
    f = jnp.dot(att.astype(jnp.bfloat16), w1_ref[...],
                preferred_element_type=jnp.float32) + c1_ref[...]
    f = jnp.maximum(f, 0.0)
    y = jnp.dot(f.astype(jnp.bfloat16), w2_ref[...],
                preferred_element_type=jnp.float32) + c2_ref[...]

    # ---------------- BatchNorm1d #2 (residual) --------------------------------
    z = att + y
    mu2 = jnp.mean(z, axis=0, keepdims=True)
    zc = z - mu2
    var2 = jnp.mean(zc * zc, axis=0, keepdims=True)
    h_out = zc * lax.rsqrt(var2 + BN_EPS) * g2_ref[...] + b2_ref[...]

    # ---------------- h_out[mask] = 0 ------------------------------------------
    out_ref[...] = h_out * keep_ref[...]                           # (N*L, D)


def prepare_params(params):
    """One-time weight preparation, hoisted out of the per-call path:
    fuse Q|K|V into one (D, 3*H*dh) bf16 slab (scale folded into Q), fuse the
    per-head output projections, cast FF weights to bf16, reshape biases."""
    D, H, dh = MODEL_SIZE, HEAD_COUNT, HEAD_DIM
    scale = 1.0 / math.sqrt(dh)
    wq = jnp.transpose(params['wq'], (1, 0, 2)).reshape(D, H * dh) * scale
    wk = jnp.transpose(params['wk'], (1, 0, 2)).reshape(D, H * dh)
    wv = jnp.transpose(params['wv'], (1, 0, 2)).reshape(D, H * dh)
    return {
        'wqkv': jnp.concatenate([wq, wk, wv], axis=1).astype(jnp.bfloat16),   # (D, 96)
        'wo': params['wo'].reshape(H * dh, D).astype(jnp.bfloat16),           # (32, 32)
        'bn1_g': params['bn1_g'].reshape(1, D).astype(jnp.float32),
        'bn1_b': params['bn1_b'].reshape(1, D).astype(jnp.float32),
        'ff1_w': params['ff1_w'].astype(jnp.bfloat16),
        'ff1_b': params['ff1_b'].reshape(1, FF_SIZE).astype(jnp.float32),
        'ff2_w': params['ff2_w'].astype(jnp.bfloat16),
        'ff2_b': params['ff2_b'].reshape(1, MODEL_SIZE).astype(jnp.float32),
        'bn2_g': params['bn2_g'].reshape(1, D).astype(jnp.float32),
        'bn2_b': params['bn2_b'].reshape(1, D).astype(jnp.float32),
    }


def transformer_encoder_layer(h_in, mask, prep):
    N, L, D = h_in.shape

    maskf = mask.astype(jnp.float32)                       # 1.0 == masked
    key_bias = (maskf * NEG_INF).reshape(N, 1, L)          # additive key bias
    keep = (1.0 - maskf).reshape(N * L, 1)                 # row zeroing factor
    h_flat = h_in.reshape(N * L, D).astype(jnp.float32)

    args = (
        h_flat, key_bias, keep,
        prep['wqkv'], prep['wo'],
        prep['bn1_g'], prep['bn1_b'],
        prep['ff1_w'], prep['ff1_b'], prep['ff2_w'], prep['ff2_b'],
        prep['bn2_g'], prep['bn2_b'],
    )
    vspec = pl.BlockSpec(memory_space=pltpu.MemorySpace.VMEM)
    kernel = functools.partial(encoder_layer_kernel, N, L)
    out_flat = pl.pallas_call(
        kernel,
        out_shape=jax.ShapeDtypeStruct((N * L, D), jnp.float32),
        in_specs=[vspec] * len(args),
        out_specs=vspec,
        # <= 48 MiB: above v5e's 16 MiB scoped default, below v7x's 64 MiB VMEM.
        compiler_params=pltpu.CompilerParams(vmem_limit_bytes=48 * 1024 * 1024),
    )(*args)
    return out_flat.reshape(N, L, D)


def init_params(key):
    ks = jax.random.split(key, 8)
    scale = 0.1
    return {
        'wq': scale * jax.random.normal(ks[0], (HEAD_COUNT, MODEL_SIZE, HEAD_DIM), jnp.float32),
        'wk': scale * jax.random.normal(ks[1], (HEAD_COUNT, MODEL_SIZE, HEAD_DIM), jnp.float32),
        'wv': scale * jax.random.normal(ks[2], (HEAD_COUNT, MODEL_SIZE, HEAD_DIM), jnp.float32),
        'wo': scale * jax.random.normal(ks[3], (HEAD_COUNT, HEAD_DIM, MODEL_SIZE), jnp.float32),
        'bn1_g': jnp.ones((MODEL_SIZE,), jnp.float32),
        'bn1_b': jnp.zeros((MODEL_SIZE,), jnp.float32),
        'ff1_w': scale * jax.random.normal(ks[4], (MODEL_SIZE, FF_SIZE), jnp.float32),
        'ff1_b': scale * jax.random.normal(ks[5], (FF_SIZE,), jnp.float32),
        'ff2_w': scale * jax.random.normal(ks[6], (FF_SIZE, MODEL_SIZE), jnp.float32),
        'ff2_b': scale * jax.random.normal(ks[7], (MODEL_SIZE,), jnp.float32),
        'bn2_g': jnp.ones((MODEL_SIZE,), jnp.float32),
        'bn2_b': jnp.zeros((MODEL_SIZE,), jnp.float32),
    }


if __name__ == "__main__":
    key = jax.random.PRNGKey(0)
    k_h, k_p = jax.random.split(key)

    N, L = 2, 8
    h_in = jax.random.normal(k_h, (N, L, MODEL_SIZE), jnp.float32)

    # mask: True (1.0) == masked position. Leave most positions unmasked.
    mask = jnp.zeros((N, L), jnp.float32)
    mask = mask.at[0, L - 1].set(1.0)
    mask = mask.at[1, L - 2].set(1.0)
    mask = mask.at[1, L - 1].set(1.0)

    params = init_params(k_p)
    prep = prepare_params(params)           # hoisted: done once, not per call
    prep = jax.tree_util.tree_map(jax.block_until_ready, prep)

    fwd = jax.jit(transformer_encoder_layer)
    out = fwd(h_in, mask, prep)
    out = jax.block_until_ready(out)

    assert out.shape == (N, L, MODEL_SIZE)
    assert bool(jnp.all(jnp.isfinite(out)))
    # masked rows must be exactly zero (h_out[mask] = 0)
    assert float(jnp.max(jnp.abs(out[0, L - 1]))) == 0.0
    assert float(jnp.max(jnp.abs(out[1, L - 2:]))) == 0.0
    print("KERNEL_OK")
</pallas_src>

<mosaic_0001>
module attributes {stable_mosaic.version = 11 : i64} {
  func.func @encoder_layer_kernel(%arg0: memref<16x32xf32, #tpu.memory_space<vmem>>, %arg1: memref<2x1x8xf32, #tpu.memory_space<vmem>>, %arg2: memref<16x1xf32, #tpu.memory_space<vmem>>, %arg3: memref<32x96xbf16, #tpu.memory_space<vmem>>, %arg4: memref<32x32xbf16, #tpu.memory_space<vmem>>, %arg5: memref<1x32xf32, #tpu.memory_space<vmem>>, %arg6: memref<1x32xf32, #tpu.memory_space<vmem>>, %arg7: memref<32x64xbf16, #tpu.memory_space<vmem>>, %arg8: memref<1x64xf32, #tpu.memory_space<vmem>>, %arg9: memref<64x32xbf16, #tpu.memory_space<vmem>>, %arg10: memref<1x32xf32, #tpu.memory_space<vmem>>, %arg11: memref<1x32xf32, #tpu.memory_space<vmem>>, %arg12: memref<1x32xf32, #tpu.memory_space<vmem>>, %arg13: memref<16x32xf32, #tpu.memory_space<vmem>>) attributes {dimension_semantics = [], scalar_prefetch = 0 : i64, scratch_operands = 0 : i64, tpu.core_type = #tpu.core_type<tc>} {
    %c0 = arith.constant 0 : index
    %c0_0 = arith.constant 0 : index
    %0 = vector.load %arg0[%c0, %c0_0] : memref<16x32xf32, #tpu.memory_space<vmem>>, vector<16x32xf32>
    %1 = arith.truncf %0 : vector<16x32xf32> to vector<16x32xbf16>
    %c0_1 = arith.constant 0 : index
    %c0_2 = arith.constant 0 : index
    %2 = vector.load %arg3[%c0_1, %c0_2] : memref<32x96xbf16, #tpu.memory_space<vmem>>, vector<32x96xbf16>
    %cst = arith.constant dense<0.000000e+00> : vector<16x96xf32>
    %3 = tpu.matmul %1, %2, %cst {dimension_numbers = #tpu.dot_dimension_numbers<[1], [0], [0], [1], [0, 0, 1, 1], [], []>} : vector<16x32xbf16>, vector<32x96xbf16>, vector<16x96xf32> -> vector<16x96xf32>
    %c0_3 = arith.constant 0 : index
    %c0_4 = arith.constant 0 : index
    %c0_5 = arith.constant 0 : index
    %4 = vector.load %arg1[%c0_3, %c0_4, %c0_5] : memref<2x1x8xf32, #tpu.memory_space<vmem>>, vector<2x1x8xf32>
    %5 = vector.extract_strided_slice %3 {offsets = [0, 0], sizes = [16, 8], strides = [1, 1]} : vector<16x96xf32> to vector<16x8xf32>
    %6 = vector.shape_cast %5 : vector<16x8xf32> to vector<2x8x8xf32>
    %7 = arith.truncf %6 : vector<2x8x8xf32> to vector<2x8x8xbf16>
    %8 = vector.extract_strided_slice %3 {offsets = [0, 32], sizes = [16, 8], strides = [1, 1]} : vector<16x96xf32> to vector<16x8xf32>
    %9 = vector.shape_cast %8 : vector<16x8xf32> to vector<2x8x8xf32>
    %10 = arith.truncf %9 : vector<2x8x8xf32> to vector<2x8x8xbf16>
    %11 = vector.extract_strided_slice %3 {offsets = [0, 64], sizes = [16, 8], strides = [1, 1]} : vector<16x96xf32> to vector<16x8xf32>
    %12 = vector.shape_cast %11 : vector<16x8xf32> to vector<2x8x8xf32>
    %13 = arith.truncf %12 : vector<2x8x8xf32> to vector<2x8x8xbf16>
    "tpu.trace_start"() <{level = 10 : i32, message = "nqd,nkd->nqk"}> : () -> ()
    %cst_6 = arith.constant dense<0.000000e+00> : vector<2x8x8xf32>
    %14 = tpu.matmul %7, %10, %cst_6 {dimension_numbers = #tpu.dot_dimension_numbers<[2], [2], [1], [1], [0, 0, 0, 1, 1, 1], [0], [0]>} : vector<2x8x8xbf16>, vector<2x8x8xbf16>, vector<2x8x8xf32> -> vector<2x8x8xf32>
    "tpu.trace_stop"() : () -> ()
    %15 = vector.broadcast %4 : vector<2x1x8xf32> to vector<2x8x8xf32>
    %16 = arith.addf %14, %15 : vector<2x8x8xf32>
    %cst_7 = arith.constant dense<0xFF800000> : vector<2x8xf32>
    %17 = vector.multi_reduction <maximumf>, %16, %cst_7 [2] : vector<2x8x8xf32> to vector<2x8xf32>
    %18 = vector.shape_cast %17 : vector<2x8xf32> to vector<2x8x1xf32>
    %19 = vector.broadcast %18 : vector<2x8x1xf32> to vector<2x8x8xf32>
    %20 = arith.subf %16, %19 : vector<2x8x8xf32>
    %21 = math.exp %20 : vector<2x8x8xf32>
    %cst_8 = arith.constant dense<0.000000e+00> : vector<2x8xf32>
    %22 = vector.multi_reduction <add>, %21, %cst_8 [2] : vector<2x8x8xf32> to vector<2x8xf32>
    %23 = vector.shape_cast %22 : vector<2x8xf32> to vector<2x8x1xf32>
    %24 = arith.truncf %21 : vector<2x8x8xf32> to vector<2x8x8xbf16>
    "tpu.trace_start"() <{level = 10 : i32, message = "nqk,nkd->nqd"}> : () -> ()
    %cst_9 = arith.constant dense<0.000000e+00> : vector<2x8x8xf32>
    %25 = tpu.matmul %24, %13, %cst_9 {dimension_numbers = #tpu.dot_dimension_numbers<[2], [1], [1], [2], [0, 0, 0, 1, 1, 2], [0], [0]>} : vector<2x8x8xbf16>, vector<2x8x8xbf16>, vector<2x8x8xf32> -> vector<2x8x8xf32>
    "tpu.trace_stop"() : () -> ()
    %26 = vector.broadcast %23 : vector<2x8x1xf32> to vector<2x8x8xf32>
    %27 = arith.divf %25, %26 : vector<2x8x8xf32>
    %28 = vector.shape_cast %27 : vector<2x8x8xf32> to vector<16x8xf32>
    %29 = vector.extract_strided_slice %3 {offsets = [0, 8], sizes = [16, 8], strides = [1, 1]} : vector<16x96xf32> to vector<16x8xf32>
    %30 = vector.shape_cast %29 : vector<16x8xf32> to vector<2x8x8xf32>
    %31 = arith.truncf %30 : vector<2x8x8xf32> to vector<2x8x8xbf16>
    %32 = vector.extract_strided_slice %3 {offsets = [0, 40], sizes = [16, 8], strides = [1, 1]} : vector<16x96xf32> to vector<16x8xf32>
    %33 = vector.shape_cast %32 : vector<16x8xf32> to vector<2x8x8xf32>
    %34 = arith.truncf %33 : vector<2x8x8xf32> to vector<2x8x8xbf16>
    %35 = vector.extract_strided_slice %3 {offsets = [0, 72], sizes = [16, 8], strides = [1, 1]} : vector<16x96xf32> to vector<16x8xf32>
    %36 = vector.shape_cast %35 : vector<16x8xf32> to vector<2x8x8xf32>
    %37 = arith.truncf %36 : vector<2x8x8xf32> to vector<2x8x8xbf16>
    "tpu.trace_start"() <{level = 10 : i32, message = "nqd,nkd->nqk"}> : () -> ()
    %cst_10 = arith.constant dense<0.000000e+00> : vector<2x8x8xf32>
    %38 = tpu.matmul %31, %34, %cst_10 {dimension_numbers = #tpu.dot_dimension_numbers<[2], [2], [1], [1], [0, 0, 0, 1, 1, 1], [0], [0]>} : vector<2x8x8xbf16>, vector<2x8x8xbf16>, vector<2x8x8xf32> -> vector<2x8x8xf32>
    "tpu.trace_stop"() : () -> ()
    %39 = vector.broadcast %4 : vector<2x1x8xf32> to vector<2x8x8xf32>
    %40 = arith.addf %38, %39 : vector<2x8x8xf32>
    %cst_11 = arith.constant dense<0xFF800000> : vector<2x8xf32>
    %41 = vector.multi_reduction <maximumf>, %40, %cst_11 [2] : vector<2x8x8xf32> to vector<2x8xf32>
    %42 = vector.shape_cast %41 : vector<2x8xf32> to vector<2x8x1xf32>
    %43 = vector.broadcast %42 : vector<2x8x1xf32> to vector<2x8x8xf32>
    %44 = arith.subf %40, %43 : vector<2x8x8xf32>
    %45 = math.exp %44 : vector<2x8x8xf32>
    %cst_12 = arith.constant dense<0.000000e+00> : vector<2x8xf32>
    %46 = vector.multi_reduction <add>, %45, %cst_12 [2] : vector<2x8x8xf32> to vector<2x8xf32>
    %47 = vector.shape_cast %46 : vector<2x8xf32> to vector<2x8x1xf32>
    %48 = arith.truncf %45 : vector<2x8x8xf32> to vector<2x8x8xbf16>
    "tpu.trace_start"() <{level = 10 : i32, message = "nqk,nkd->nqd"}> : () -> ()
    %cst_13 = arith.constant dense<0.000000e+00> : vector<2x8x8xf32>
    %49 = tpu.matmul %48, %37, %cst_13 {dimension_numbers = #tpu.dot_dimension_numbers<[2], [1], [1], [2], [0, 0, 0, 1, 1, 2], [0], [0]>} : vector<2x8x8xbf16>, vector<2x8x8xbf16>, vector<2x8x8xf32> -> vector<2x8x8xf32>
    "tpu.trace_stop"() : () -> ()
    %50 = vector.broadcast %47 : vector<2x8x1xf32> to vector<2x8x8xf32>
    %51 = arith.divf %49, %50 : vector<2x8x8xf32>
    %52 = vector.shape_cast %51 : vector<2x8x8xf32> to vector<16x8xf32>
    %53 = vector.extract_strided_slice %3 {offsets = [0, 16], sizes = [16, 8], strides = [1, 1]} : vector<16x96xf32> to vector<16x8xf32>
    %54 = vector.shape_cast %53 : vector<16x8xf32> to vector<2x8x8xf32>
    %55 = arith.truncf %54 : vector<2x8x8xf32> to vector<2x8x8xbf16>
    %56 = vector.extract_strided_slice %3 {offsets = [0, 48], sizes = [16, 8], strides = [1, 1]} : vector<16x96xf32> to vector<16x8xf32>
    %57 = vector.shape_cast %56 : vector<16x8xf32> to vector<2x8x8xf32>
    %58 = arith.truncf %57 : vector<2x8x8xf32> to vector<2x8x8xbf16>
    %59 = vector.extract_strided_slice %3 {offsets = [0, 80], sizes = [16, 8], strides = [1, 1]} : vector<16x96xf32> to vector<16x8xf32>
    %60 = vector.shape_cast %59 : vector<16x8xf32> to vector<2x8x8xf32>
    %61 = arith.truncf %60 : vector<2x8x8xf32> to vector<2x8x8xbf16>
    "tpu.trace_start"() <{level = 10 : i32, message = "nqd,nkd->nqk"}> : () -> ()
    %cst_14 = arith.constant dense<0.000000e+00> : vector<2x8x8xf32>
    %62 = tpu.matmul %55, %58, %cst_14 {dimension_numbers = #tpu.dot_dimension_numbers<[2], [2], [1], [1], [0, 0, 0, 1, 1, 1], [0], [0]>} : vector<2x8x8xbf16>, vector<2x8x8xbf16>, vector<2x8x8xf32> -> vector<2x8x8xf32>
    "tpu.trace_stop"() : () -> ()
    %63 = vector.broadcast %4 : vector<2x1x8xf32> to vector<2x8x8xf32>
    %64 = arith.addf %62, %63 : vector<2x8x8xf32>
    %cst_15 = arith.constant dense<0xFF800000> : vector<2x8xf32>
    %65 = vector.multi_reduction <maximumf>, %64, %cst_15 [2] : vector<2x8x8xf32> to vector<2x8xf32>
    %66 = vector.shape_cast %65 : vector<2x8xf32> to vector<2x8x1xf32>
    %67 = vector.broadcast %66 : vector<2x8x1xf32> to vector<2x8x8xf32>
    %68 = arith.subf %64, %67 : vector<2x8x8xf32>
    %69 = math.exp %68 : vector<2x8x8xf32>
    %cst_16 = arith.constant dense<0.000000e+00> : vector<2x8xf32>
    %70 = vector.multi_reduction <add>, %69, %cst_16 [2] : vector<2x8x8xf32> to vector<2x8xf32>
    %71 = vector.shape_cast %70 : vector<2x8xf32> to vector<2x8x1xf32>
    %72 = arith.truncf %69 : vector<2x8x8xf32> to vector<2x8x8xbf16>
    "tpu.trace_start"() <{level = 10 : i32, message = "nqk,nkd->nqd"}> : () -> ()
    %cst_17 = arith.constant dense<0.000000e+00> : vector<2x8x8xf32>
    %73 = tpu.matmul %72, %61, %cst_17 {dimension_numbers = #tpu.dot_dimension_numbers<[2], [1], [1], [2], [0, 0, 0, 1, 1, 2], [0], [0]>} : vector<2x8x8xbf16>, vector<2x8x8xbf16>, vector<2x8x8xf32> -> vector<2x8x8xf32>
    "tpu.trace_stop"() : () -> ()
    %74 = vector.broadcast %71 : vector<2x8x1xf32> to vector<2x8x8xf32>
    %75 = arith.divf %73, %74 : vector<2x8x8xf32>
    %76 = vector.shape_cast %75 : vector<2x8x8xf32> to vector<16x8xf32>
    %77 = vector.extract_strided_slice %3 {offsets = [0, 24], sizes = [16, 8], strides = [1, 1]} : vector<16x96xf32> to vector<16x8xf32>
    %78 = vector.shape_cast %77 : vector<16x8xf32> to vector<2x8x8xf32>
    %79 = arith.truncf %78 : vector<2x8x8xf32> to vector<2x8x8xbf16>
    %80 = vector.extract_strided_slice %3 {offsets = [0, 56], sizes = [16, 8], strides = [1, 1]} : vector<16x96xf32> to vector<16x8xf32>
    %81 = vector.shape_cast %80 : vector<16x8xf32> to vector<2x8x8xf32>
    %82 = arith.truncf %81 : vector<2x8x8xf32> to vector<2x8x8xbf16>
    %83 = vector.extract_strided_slice %3 {offsets = [0, 88], sizes = [16, 8], strides = [1, 1]} : vector<16x96xf32> to vector<16x8xf32>
    %84 = vector.shape_cast %83 : vector<16x8xf32> to vector<2x8x8xf32>
    %85 = arith.truncf %84 : vector<2x8x8xf32> to vector<2x8x8xbf16>
    "tpu.trace_start"() <{level = 10 : i32, message = "nqd,nkd->nqk"}> : () -> ()
    %cst_18 = arith.constant dense<0.000000e+00> : vector<2x8x8xf32>
    %86 = tpu.matmul %79, %82, %cst_18 {dimension_numbers = #tpu.dot_dimension_numbers<[2], [2], [1], [1], [0, 0, 0, 1, 1, 1], [0], [0]>} : vector<2x8x8xbf16>, vector<2x8x8xbf16>, vector<2x8x8xf32> -> vector<2x8x8xf32>
    "tpu.trace_stop"() : () -> ()
    %87 = vector.broadcast %4 : vector<2x1x8xf32> to vector<2x8x8xf32>
    %88 = arith.addf %86, %87 : vector<2x8x8xf32>
    %cst_19 = arith.constant dense<0xFF800000> : vector<2x8xf32>
    %89 = vector.multi_reduction <maximumf>, %88, %cst_19 [2] : vector<2x8x8xf32> to vector<2x8xf32>
    %90 = vector.shape_cast %89 : vector<2x8xf32> to vector<2x8x1xf32>
    %91 = vector.broadcast %90 : vector<2x8x1xf32> to vector<2x8x8xf32>
    %92 = arith.subf %88, %91 : vector<2x8x8xf32>
    %93 = math.exp %92 : vector<2x8x8xf32>
    %cst_20 = arith.constant dense<0.000000e+00> : vector<2x8xf32>
    %94 = vector.multi_reduction <add>, %93, %cst_20 [2] : vector<2x8x8xf32> to vector<2x8xf32>
    %95 = vector.shape_cast %94 : vector<2x8xf32> to vector<2x8x1xf32>
    %96 = arith.truncf %93 : vector<2x8x8xf32> to vector<2x8x8xbf16>
    "tpu.trace_start"() <{level = 10 : i32, message = "nqk,nkd->nqd"}> : () -> ()
    %cst_21 = arith.constant dense<0.000000e+00> : vector<2x8x8xf32>
    %97 = tpu.matmul %96, %85, %cst_21 {dimension_numbers = #tpu.dot_dimension_numbers<[2], [1], [1], [2], [0, 0, 0, 1, 1, 2], [0], [0]>} : vector<2x8x8xbf16>, vector<2x8x8xbf16>, vector<2x8x8xf32> -> vector<2x8x8xf32>
    "tpu.trace_stop"() : () -> ()
    %98 = vector.broadcast %95 : vector<2x8x1xf32> to vector<2x8x8xf32>
    %99 = arith.divf %97, %98 : vector<2x8x8xf32>
    %100 = vector.shape_cast %99 : vector<2x8x8xf32> to vector<16x8xf32>
    %101 = tpu.concatenate %28, %52, %76, %100 in 1 : vector<16x8xf32>, vector<16x8xf32>, vector<16x8xf32>, vector<16x8xf32> -> vector<16x32xf32>
    %102 = arith.truncf %101 : vector<16x32xf32> to vector<16x32xbf16>
    %c0_22 = arith.constant 0 : index
    %c0_23 = arith.constant 0 : index
    %103 = vector.load %arg4[%c0_22, %c0_23] : memref<32x32xbf16, #tpu.memory_space<vmem>>, vector<32x32xbf16>
    %cst_24 = arith.constant dense<0.000000e+00> : vector<16x32xf32>
    %104 = tpu.matmul %102, %103, %cst_24 {dimension_numbers = #tpu.dot_dimension_numbers<[1], [0], [0], [1], [0, 0, 1, 1], [], []>} : vector<16x32xbf16>, vector<32x32xbf16>, vector<16x32xf32> -> vector<16x32xf32>
    %105 = arith.addf %0, %104 : vector<16x32xf32>
    %cst_25 = arith.constant dense<0.000000e+00> : vector<32xf32>
    %106 = vector.multi_reduction <add>, %105, %cst_25 [0] : vector<16x32xf32> to vector<32xf32>
    %107 = vector.shape_cast %106 : vector<32xf32> to vector<1x32xf32>
    %cst_26 = arith.constant 1.600000e+01 : f32
    %108 = vector.broadcast %cst_26 : f32 to vector<1x32xf32>
    %109 = arith.divf %107, %108 : vector<1x32xf32>
    %110 = vector.broadcast %109 : vector<1x32xf32> to vector<16x32xf32>
    %111 = arith.subf %105, %110 : vector<16x32xf32>
    %112 = arith.mulf %111, %111 : vector<16x32xf32>
    %cst_27 = arith.constant dense<0.000000e+00> : vector<32xf32>
    %113 = vector.multi_reduction <add>, %112, %cst_27 [0] : vector<16x32xf32> to vector<32xf32>
    %114 = vector.shape_cast %113 : vector<32xf32> to vector<1x32xf32>
    %cst_28 = arith.constant 1.600000e+01 : f32
    %115 = vector.broadcast %cst_28 : f32 to vector<1x32xf32>
    %116 = arith.divf %114, %115 : vector<1x32xf32>
    %cst_29 = arith.constant 9.99999974E-6 : f32
    %117 = vector.broadcast %cst_29 : f32 to vector<1x32xf32>
    %118 = arith.addf %116, %117 : vector<1x32xf32>
    %119 = math.rsqrt %118 : vector<1x32xf32>
    %120 = vector.broadcast %119 : vector<1x32xf32> to vector<16x32xf32>
    %121 = arith.mulf %111, %120 : vector<16x32xf32>
    %c0_30 = arith.constant 0 : index
    %c0_31 = arith.constant 0 : index
    %122 = vector.load %arg5[%c0_30, %c0_31] : memref<1x32xf32, #tpu.memory_space<vmem>>, vector<1x32xf32>
    %123 = vector.broadcast %122 : vector<1x32xf32> to vector<16x32xf32>
    %124 = arith.mulf %121, %123 : vector<16x32xf32>
    %c0_32 = arith.constant 0 : index
    %c0_33 = arith.constant 0 : index
    %125 = vector.load %arg6[%c0_32, %c0_33] : memref<1x32xf32, #tpu.memory_space<vmem>>, vector<1x32xf32>
    %126 = vector.broadcast %125 : vector<1x32xf32> to vector<16x32xf32>
    %127 = arith.addf %124, %126 : vector<16x32xf32>
    %128 = arith.truncf %127 : vector<16x32xf32> to vector<16x32xbf16>
    %c0_34 = arith.constant 0 : index
    %c0_35 = arith.constant 0 : index
    %129 = vector.load %arg7[%c0_34, %c0_35] : memref<32x64xbf16, #tpu.memory_space<vmem>>, vector<32x64xbf16>
    %cst_36 = arith.constant dense<0.000000e+00> : vector<16x64xf32>
    %130 = tpu.matmul %128, %129, %cst_36 {dimension_numbers = #tpu.dot_dimension_numbers<[1], [0], [0], [1], [0, 0, 1, 1], [], []>} : vector<16x32xbf16>, vector<32x64xbf16>, vector<16x64xf32> -> vector<16x64xf32>
    %c0_37 = arith.constant 0 : index
    %c0_38 = arith.constant 0 : index
    %131 = vector.load %arg8[%c0_37, %c0_38] : memref<1x64xf32, #tpu.memory_space<vmem>>, vector<1x64xf32>
    %132 = vector.broadcast %131 : vector<1x64xf32> to vector<16x64xf32>
    %133 = arith.addf %130, %132 : vector<16x64xf32>
    %cst_39 = arith.constant 0.000000e+00 : f32
    %134 = vector.broadcast %cst_39 : f32 to vector<16x64xf32>
    %135 = arith.maximumf %133, %134 : vector<16x64xf32>
    %136 = arith.truncf %135 : vector<16x64xf32> to vector<16x64xbf16>
    %c0_40 = arith.constant 0 : index
    %c0_41 = arith.constant 0 : index
    %137 = vector.load %arg9[%c0_40, %c0_41] : memref<64x32xbf16, #tpu.memory_space<vmem>>, vector<64x32xbf16>
    %cst_42 = arith.constant dense<0.000000e+00> : vector<16x32xf32>
    %138 = tpu.matmul %136, %137, %cst_42 {dimension_numbers = #tpu.dot_dimension_numbers<[1], [0], [0], [1], [0, 0, 1, 1], [], []>} : vector<16x64xbf16>, vector<64x32xbf16>, vector<16x32xf32> -> vector<16x32xf32>
    %c0_43 = arith.constant 0 : index
    %c0_44 = arith.constant 0 : index
    %139 = vector.load %arg10[%c0_43, %c0_44] : memref<1x32xf32, #tpu.memory_space<vmem>>, vector<1x32xf32>
    %140 = vector.broadcast %139 : vector<1x32xf32> to vector<16x32xf32>
    %141 = arith.addf %138, %140 : vector<16x32xf32>
    %142 = arith.addf %127, %141 : vector<16x32xf32>
    %cst_45 = arith.constant dense<0.000000e+00> : vector<32xf32>
    %143 = vector.multi_reduction <add>, %142, %cst_45 [0] : vector<16x32xf32> to vector<32xf32>
    %144 = vector.shape_cast %143 : vector<32xf32> to vector<1x32xf32>
    %cst_46 = arith.constant 1.600000e+01 : f32
    %145 = vector.broadcast %cst_46 : f32 to vector<1x32xf32>
    %146 = arith.divf %144, %145 : vector<1x32xf32>
    %147 = vector.broadcast %146 : vector<1x32xf32> to vector<16x32xf32>
    %148 = arith.subf %142, %147 : vector<16x32xf32>
    %149 = arith.mulf %148, %148 : vector<16x32xf32>
    %cst_47 = arith.constant dense<0.000000e+00> : vector<32xf32>
    %150 = vector.multi_reduction <add>, %149, %cst_47 [0] : vector<16x32xf32> to vector<32xf32>
    %151 = vector.shape_cast %150 : vector<32xf32> to vector<1x32xf32>
    %cst_48 = arith.constant 1.600000e+01 : f32
    %152 = vector.broadcast %cst_48 : f32 to vector<1x32xf32>
    %153 = arith.divf %151, %152 : vector<1x32xf32>
    %cst_49 = arith.constant 9.99999974E-6 : f32
    %154 = vector.broadcast %cst_49 : f32 to vector<1x32xf32>
    %155 = arith.addf %153, %154 : vector<1x32xf32>
    %156 = math.rsqrt %155 : vector<1x32xf32>
    %157 = vector.broadcast %156 : vector<1x32xf32> to vector<16x32xf32>
    %158 = arith.mulf %148, %157 : vector<16x32xf32>
    %c0_50 = arith.constant 0 : index
    %c0_51 = arith.constant 0 : index
    %159 = vector.load %arg11[%c0_50, %c0_51] : memref<1x32xf32, #tpu.memory_space<vmem>>, vector<1x32xf32>
    %160 = vector.broadcast %159 : vector<1x32xf32> to vector<16x32xf32>
    %161 = arith.mulf %158, %160 : vector<16x32xf32>
    %c0_52 = arith.constant 0 : index
    %c0_53 = arith.constant 0 : index
    %162 = vector.load %arg12[%c0_52, %c0_53] : memref<1x32xf32, #tpu.memory_space<vmem>>, vector<1x32xf32>
    %163 = vector.broadcast %162 : vector<1x32xf32> to vector<16x32xf32>
    %164 = arith.addf %161, %163 : vector<16x32xf32>
    %c0_54 = arith.constant 0 : index
    %c0_55 = arith.constant 0 : index
    %165 = vector.load %arg2[%c0_54, %c0_55] : memref<16x1xf32, #tpu.memory_space<vmem>>, vector<16x1xf32>
    %166 = vector.broadcast %165 : vector<16x1xf32> to vector<16x32xf32>
    %167 = arith.mulf %164, %166 : vector<16x32xf32>
    %c0_56 = arith.constant 0 : index
    %c0_57 = arith.constant 0 : index
    %168 = vector.load %arg13[%c0_56, %c0_57] : memref<16x32xf32, #tpu.memory_space<vmem>>, vector<16x32xf32>
    tpu.vector_store %arg13[%c0_56, %c0_57], %167 {strides = array<i32>} : memref<16x32xf32, #tpu.memory_space<vmem>>, vector<16x32xf32>,
    return
  }
}

</mosaic_0001>

<llo_original>
// kernel: transformer_encoder_layer.1
$region0: #{transformer_encoder_layer.1}
  #allocation0 [shape = 'u32[]', space=smem, size = 0x4, offset = 0x4, fixed_abs, tag = 'smem constant byte address 0x4 - core index']
  #allocation1 [shape = 'u32[144,128]{1,0:T(1,128)}', space=vmem, size = 0x12000, scoped, tag = 'internal scratch']
  %s0 = inlined_call_operand.vmem [shape: f32[16,32], index: 0, kind: input, shape index: {}]
  %s1 = inlined_call_operand.vmem [shape: f32[2,1,8], index: 1, kind: input, shape index: {}]
  %s2 = inlined_call_operand.vmem [shape: f32[16,1], index: 2, kind: input, shape index: {}]
  %s3 = inlined_call_operand.vmem [shape: bf16[32,96], index: 3, kind: input, shape index: {}]
  %s4 = inlined_call_operand.vmem [shape: bf16[32,32], index: 4, kind: input, shape index: {}]
  %s5 = inlined_call_operand.vmem [shape: f32[1,32], index: 5, kind: input, shape index: {}]
  %s6 = inlined_call_operand.vmem [shape: f32[1,32], index: 6, kind: input, shape index: {}]
  %s7 = inlined_call_operand.vmem [shape: bf16[32,64], index: 7, kind: input, shape index: {}]
  %s8 = inlined_call_operand.vmem [shape: f32[1,64], index: 8, kind: input, shape index: {}]
  %s9 = inlined_call_operand.vmem [shape: bf16[64,32], index: 9, kind: input, shape index: {}]
  %s10 = inlined_call_operand.vmem [shape: f32[1,32], index: 10, kind: input, shape index: {}]
  %s11 = inlined_call_operand.vmem [shape: f32[1,32], index: 11, kind: input, shape index: {}]
  %s12 = inlined_call_operand.vmem [shape: f32[1,32], index: 12, kind: input, shape index: {}]
  %s13 = inlined_call_operand.hbm [shape: f32[16,32], index: 13, kind: output, shape index: {}]
  %s14 = sld [smem:[#allocation0]]
  $region62: #{transformer_encoder_layer.1} parent=0
    _
  %s16 = ssub.s32 1, %s14
  %s17 = scalar_select 0, %s16, %s14
  $region1: #{transformer_encoder_layer.1} parent=0
    #allocation2 [shape = 'u8[8192]{0}', space=vmem, size = 0x2000, scoped, tag = 'output window, operand 0, single buffered']
    #allocation3 [shape = 's32[1]{0}', space=sflag, size = 0x4, scoped, tag = 'scoped memory for transformer_encoder_layer.1']
    %18 = vsyncpa [#allocation3], 0
    // Predicated region
    $region2: #{transformer_encoder_layer.1} parent=1 // pred_check
      _
    $region3: #{transformer_encoder_layer.1} parent=1 // pred_check_branch
      %20 = sbr.rel (0) target = $region5
    $region4: #{transformer_encoder_layer.1} parent=1 // pred_region
      _
    $region5: #{transformer_encoder_layer.1} parent=1 // pred_fallthru
      _
    // Predicated region
    $region6: #{transformer_encoder_layer.1} parent=1 // pred_check
      _
    $region7: #{transformer_encoder_layer.1} parent=1 // pred_check_branch
      %22 = sbr.rel (0) target = $region9
    $region8: #{transformer_encoder_layer.1} parent=1 // pred_region
      _
    $region9: #{transformer_encoder_layer.1} parent=1 // pred_fallthru
      _
    // Predicated region
    $region10: #{transformer_encoder_layer.1} parent=1 // pred_check
      _
    $region11: #{transformer_encoder_layer.1} parent=1 // pred_check_branch
      %24 = sbr.rel (0) target = $region13
    $region12: #{transformer_encoder_layer.1} parent=1 // pred_region
      _
    $region13: #{transformer_encoder_layer.1} parent=1 // pred_fallthru
      _
    // Predicated region
    $region14: #{transformer_encoder_layer.1} parent=1 // pred_check
      _
    $region15: #{transformer_encoder_layer.1} parent=1 // pred_check_branch
      %26 = sbr.rel (0) target = $region17
    $region16: #{transformer_encoder_layer.1} parent=1 // pred_region
      _
    $region17: #{transformer_encoder_layer.1} parent=1 // pred_fallthru
      _
    // Predicated region
    $region18: #{transformer_encoder_layer.1} parent=1 // pred_check
      _
    $region19: #{transformer_encoder_layer.1} parent=1 // pred_check_branch
      %28 = sbr.rel (0) target = $region21
    $region20: #{transformer_encoder_layer.1} parent=1 // pred_region
      _
    $region21: #{transformer_encoder_layer.1} parent=1 // pred_fallthru
      _
    // Predicated region
    $region22: #{transformer_encoder_layer.1} parent=1 // pred_check
      _
    $region23: #{transformer_encoder_layer.1} parent=1 // pred_check_branch
      %30 = sbr.rel (0) target = $region25
    $region24: #{transformer_encoder_layer.1} parent=1 // pred_region
      _
    $region25: #{transformer_encoder_layer.1} parent=1 // pred_fallthru
      _
    // Predicated region
    $region26: #{transformer_encoder_layer.1} parent=1 // pred_check
      _
    $region27: #{transformer_encoder_layer.1} parent=1 // pred_check_branch
      %32 = sbr.rel (0) target = $region29
    $region28: #{transformer_encoder_layer.1} parent=1 // pred_region
      _
    $region29: #{transformer_encoder_layer.1} parent=1 // pred_fallthru
      _
    // Predicated region
    $region30: #{transformer_encoder_layer.1} parent=1 // pred_check
      _
    $region31: #{transformer_encoder_layer.1} parent=1 // pred_check_branch
      %34 = sbr.rel (0) target = $region33
    $region32: #{transformer_encoder_layer.1} parent=1 // pred_region
      _
    $region33: #{transformer_encoder_layer.1} parent=1 // pred_fallthru
      _
    // Predicated region
    $region34: #{transformer_encoder_layer.1} parent=1 // pred_check
      _
    $region35: #{transformer_encoder_layer.1} parent=1 // pred_check_branch
      %36 = sbr.rel (0) target = $region37
    $region36: #{transformer_encoder_layer.1} parent=1 // pred_region
      _
    $region37: #{transformer_encoder_layer.1} parent=1 // pred_fallthru
      _
    // Predicated region
    $region38: #{transformer_encoder_layer.1} parent=1 // pred_check
      _
    $region39: #{transformer_encoder_layer.1} parent=1 // pred_check_branch
      %38 = sbr.rel (0) target = $region41
    $region40: #{transformer_encoder_layer.1} parent=1 // pred_region
      _
    $region41: #{transformer_encoder_layer.1} parent=1 // pred_fallthru
      _
    // Predicated region
    $region42: #{transformer_encoder_layer.1} parent=1 // pred_check
      _
    $region43: #{transformer_encoder_layer.1} parent=1 // pred_check_branch
      %40 = sbr.rel (0) target = $region45
    $region44: #{transformer_encoder_layer.1} parent=1 // pred_region
      _
    $region45: #{transformer_encoder_layer.1} parent=1 // pred_fallthru
      _
    // Predicated region
    $region46: #{transformer_encoder_layer.1} parent=1 // pred_check
      _
    $region47: #{transformer_encoder_layer.1} parent=1 // pred_check_branch
      %42 = sbr.rel (0) target = $region49
    $region48: #{transformer_encoder_layer.1} parent=1 // pred_region
      _
    $region49: #{transformer_encoder_layer.1} parent=1 // pred_fallthru
      _
    // Predicated region
    $region50: #{transformer_encoder_layer.1} parent=1 // pred_check
      _
    $region51: #{transformer_encoder_layer.1} parent=1 // pred_check_branch
      %44 = sbr.rel (0) target = $region53
    $region52: #{transformer_encoder_layer.1} parent=1 // pred_region
      _
    $region53: #{transformer_encoder_layer.1} parent=1 // pred_fallthru
      _
    %v46 = vld [vmem:[%s0] sm:$0xff]
    %v47 = vld [vmem:[%s0 + $0x8] sm:$0xff]
    %v48 = vpack.c.bf16 %v47, %v46
    %v49 = vld [vmem:[%s3] sm:$0xf]
    %v50 = vld [vmem:[%s3 + $0x4] sm:$0xf]
    %v51 = vld [vmem:[%s3 + $0x8] sm:$0xf]
    %v52 = vld [vmem:[%s3 + $0xc] sm:$0xf]
    %v57 = vunpack.c.l.b16 %v49
    %v58 = vunpack.c.l.b16 %v50
    %v59 = vunpack.c.l.b16 %v51
    %v60 = vunpack.c.l.b16 %v52
    %v61 = vpack.c.b16 %v58, %v57
    %v62 = vpack.c.b16 %v60, %v59
    %vm65 = vcmask 261120
    %v67 = vsel %vm65, %v48, 0
    %69 = vmatprep.subr.bf16.mxu0 0
    %70 = vmatpush1.bf16.msra.mxu0 %v61
    %71 = vmatprep.subr.bf16.mxu0 0
    %72 = vmatpush1.bf16.msra.mxu0 %v62
    %73 = vmatprep.subr.bf16.mxu0 0
    %74 = vmatpush1.bf16.msra.mxu0 0
    %75 = vmatprep.subr.bf16.mxu0 0
    %76 = vmatpush1.bf16.msra.mxu0 0
    %77 = vmatprep.subr.bf16.mxu0 0
    %78 = vmatpush1.bf16.msra.mxu0 0
    %79 = vmatprep.subr.bf16.mxu0 0
    %80 = vmatpush1.bf16.msra.mxu0 0
    %81 = vmatprep.subr.bf16.mxu0 0
    %82 = vmatpush1.bf16.msra.mxu0 0
    %83 = vmatprep.subr.bf16.mxu0 0
    %84 = vmatpush1.bf16.msra.mxu0 0
    %85 = vmatprep.subr.bf16.mxu0 0
    %86 = vmatpush1.bf16.msra.mxu0 0
    %87 = vmatprep.subr.bf16.mxu0 0
    %88 = vmatpush1.bf16.msra.mxu0 0
    %89 = vmatprep.subr.bf16.mxu0 0
    %90 = vmatpush1.bf16.msra.mxu0 0
    %91 = vmatprep.subr.bf16.mxu0 0
    %92 = vmatpush1.bf16.msra.mxu0 0
    %93 = vmatprep.subr.bf16.mxu0 0
    %94 = vmatpush1.bf16.msra.mxu0 0
    %95 = vmatprep.subr.bf16.mxu0 0
    %96 = vmatpush1.bf16.msra.mxu0 0
    %97 = vmatprep.subr.bf16.mxu0 0
    %98 = vmatpush1.bf16.msra.mxu0 0
    %99 = vmatprep.subr.bf16.mxu0 0
    %100 = vmatpush1.bf16.msra.mxu0 0
    %101 = vmatprep.mubr.bf16.mxu0 0
    %102 = vmatmul.mubr.bf16.gmra.mrb[0].mxu0 %v67
    %v103 = vpop.f32.mrb[0].mxu0
    %v104 = vadd.f32 0.0, %v103
    %v105 = vpop.f32.mrb[0].mxu0
    %v106 = vpop.f32.mrb[0].mxu0
    %v107 = vadd.f32 0.0, %v106
    %v108 = vpop.f32.mrb[0].mxu0
    %109 = vdwg.mxu0
    %v110 = vld [vmem:[%s1] sm:$0x1]
    %v111 = vld [vmem:[%s1 + $0x1] sm:$0x1]
    %v112 = vpack.c.bf16 %v104, %v104
    %v113 = vpack.c.bf16 %v107, %v107
    %v116 = vlaneseq
    %v117 = vshrl.u32 %v116, 7
    %v118 = vsub.s32 0, %v117
    %v119 = vrot.slane %v110, %v118
    %v120 = vlaneseq
    %v121 = vshrl.u32 %v120, 7
    %v122 = vsub.s32 0, %v121
    %v123 = vrot.slane %v111, %v122
    %127 = vrot.lane.b32.xlu0 %v112, 96
    %v128 = vpop.permute.xlu0 %127
    %vm129 = vcmask 64512
    %v131 = vsel %vm129, %v112, 0
    %v134 = vsel %vm129, %v128, 0
    %136 = vmatprep.subr.bf16.mxu0 0
    %137 = vmatpush1.bf16.xpose.msra.mxu0 %v134
    %138 = vmatprep.subr.bf16.mxu0 0
    %139 = vmatpush1.bf16.xpose.msra.mxu0 0
    %140 = vmatprep.subr.bf16.mxu0 0
    %141 = vmatpush1.bf16.xpose.msra.mxu0 0
    %142 = vmatprep.subr.bf16.mxu0 0
    %143 = vmatpush1.bf16.xpose.msra.mxu0 0
    %144 = vmatprep.subr.bf16.mxu0 0
    %145 = vmatpush1.bf16.xpose.msra.mxu0 0
    %146 = vmatprep.subr.bf16.mxu0 0
    %147 = vmatpush1.bf16.xpose.msra.mxu0 0
    %148 = vmatprep.subr.bf16.mxu0 0
    %149 = vmatpush1.bf16.xpose.msra.mxu0 0
    %150 = vmatprep.subr.bf16.mxu0 0
    %151 = vmatpush1.bf16.xpose.msra.mxu0 0
    %152 = vmatprep.subr.bf16.mxu0 0
    %153 = vmatpush1.bf16.xpose.msra.mxu0 0
    %154 = vmatprep.subr.bf16.mxu0 0
    %155 = vmatpush1.bf16.xpose.msra.mxu0 0
    %156 = vmatprep.subr.bf16.mxu0 0
    %157 = vmatpush1.bf16.xpose.msra.mxu0 0
    %158 = vmatprep.subr.bf16.mxu0 0
    %159 = vmatpush1.bf16.xpose.msra.mxu0 0
    %160 = vmatprep.subr.bf16.mxu0 0
    %161 = vmatpush1.bf16.xpose.msra.mxu0 0
    %162 = vmatprep.subr.bf16.mxu0 0
    %163 = vmatpush1.bf16.xpose.msra.mxu0 0
    %164 = vmatprep.subr.bf16.mxu0 0
    %165 = vmatpush1.bf16.xpose.msra.mxu0 0
    %166 = vmatprep.subr.bf16.mxu0 0
    %167 = vmatpush1.bf16.xpose.msra.mxu0 0
    %168 = vmatprep.mubr.bf16.mxu0 0
    %169 = vmatmul.mubr.bf16.gmra.mrb[0].mxu0 %v131
    %v170 = vpop.f32.mrb[0].mxu0
    %v171 = vadd.f32 %v119, %v170
    %v172 = vpop.f32.mrb[0].mxu0
    %v173 = vpop.f32.mrb[0].mxu0
    %v174 = vpop.f32.mrb[0].mxu0
    %175 = vdwg.mxu0
    %177 = vrot.lane.b32.xlu0 %v113, 96
    %v178 = vpop.permute.xlu0 %177
    %v180 = vsel %vm129, %v113, 0
    %v183 = vsel %vm129, %v178, 0
    %185 = vmatprep.subr.bf16.mxu0 0
    %186 = vmatpush1.bf16.xpose.msra.mxu0 %v183
    %187 = vmatprep.subr.bf16.mxu0 0
    %188 = vmatpush1.bf16.xpose.msra.mxu0 0
    %189 = vmatprep.subr.bf16.mxu0 0
    %190 = vmatpush1.bf16.xpose.msra.mxu0 0
    %191 = vmatprep.subr.bf16.mxu0 0
    %192 = vmatpush1.bf16.xpose.msra.mxu0 0
    %193 = vmatprep.subr.bf16.mxu0 0
    %194 = vmatpush1.bf16.xpose.msra.mxu0 0
    %195 = vmatprep.subr.bf16.mxu0 0
    %196 = vmatpush1.bf16.xpose.msra.mxu0 0
    %197 = vmatprep.subr.bf16.mxu0 0
    %198 = vmatpush1.bf16.xpose.msra.mxu0 0
    %199 = vmatprep.subr.bf16.mxu0 0
    %200 = vmatpush1.bf16.xpose.msra.mxu0 0
    %201 = vmatprep.subr.bf16.mxu0 0
    %202 = vmatpush1.bf16.xpose.msra.mxu0 0
    %203 = vmatprep.subr.bf16.mxu0 0
    %204 = vmatpush1.bf16.xpose.msra.mxu0 0
    %205 = vmatprep.subr.bf16.mxu0 0
    %206 = vmatpush1.bf16.xpose.msra.mxu0 0
    %207 = vmatprep.subr.bf16.mxu0 0
    %208 = vmatpush1.bf16.xpose.msra.mxu0 0
    %209 = vmatprep.subr.bf16.mxu0 0
    %210 = vmatpush1.bf16.xpose.msra.mxu0 0
    %211 = vmatprep.subr.bf16.mxu0 0
    %212 = vmatpush1.bf16.xpose.msra.mxu0 0
    %213 = vmatprep.subr.bf16.mxu0 0
    %214 = vmatpush1.bf16.xpose.msra.mxu0 0
    %215 = vmatprep.subr.bf16.mxu0 0
    %216 = vmatpush1.bf16.xpose.msra.mxu0 0
    %217 = vmatprep.mubr.bf16.mxu0 0
    %218 = vmatmul.mubr.bf16.gmra.mrb[0].mxu0 %v180
    %v219 = vpop.f32.mrb[0].mxu0
    %v220 = vadd.f32 %v123, %v219
    %v221 = vpop.f32.mrb[0].mxu0
    %v222 = vpop.f32.mrb[0].mxu0
    %v223 = vpop.f32.mrb[0].mxu0
    %224 = vdwg.mxu0
    %v225 = vsel %vm129, %v171, -inf
    %226 = vmax.xlane.f32.xlu0 %v225
    %v227 = vpop.xlane.xlu0 %226
    %v228 = vsel %vm129, %v220, -inf
    %229 = vmax.xlane.f32.xlu0 %v228
    %v230 = vpop.xlane.xlu0 %229
    %v231 = vsub.f32 %v171, %v227
    %v232 = vsub.f32 %v220, %v230
    %v233 = vmul.f32 %v231, 1.442695
    %v234 = vpow.pop %v233
    %v235 = vmul.f32 %v232, 1.442695
    %v236 = vpow.pop %v235
    %v237 = vsel %vm129, %v234, 0.0
    %238 = vadd.xlane.f32.xlu0 %v237
    %v239 = vpop.xlane.xlu0 %238
    %v240 = vsel %vm129, %v236, 0.0
    %241 = vadd.xlane.f32.xlu0 %v240
    %v242 = vpop.xlane.xlu0 %241
    %v243 = vpack.c.bf16 %v234, %v234
    %v244 = vpack.c.bf16 %v236, %v236
    %245 = vrot.lane.b32.xlu0 %v112, 64
    %v246 = vpop.permute.xlu0 %245
    %v248 = vsel %vm129, %v243, 0
    %vm250 = vcmask 1043456
    %v252 = vsel %vm250, %v246, 0
    %254 = vmatprep.subr.bf16.mxu0 0
    %255 = vmatpush1.bf16.msra.mxu0 %v252
    %256 = vmatprep.subr.bf16.mxu0 0
    %257 = vmatpush1.bf16.msra.mxu0 0
    %258 = vmatprep.subr.bf16.mxu0 0
    %259 = vmatpush1.bf16.msra.mxu0 0
    %260 = vmatprep.subr.bf16.mxu0 0
    %261 = vmatpush1.bf16.msra.mxu0 0
    %262 = vmatprep.subr.bf16.mxu0 0
    %263 = vmatpush1.bf16.msra.mxu0 0
    %264 = vmatprep.subr.bf16.mxu0 0
    %265 = vmatpush1.bf16.msra.mxu0 0
    %266 = vmatprep.subr.bf16.mxu0 0
    %267 = vmatpush1.bf16.msra.mxu0 0
    %268 = vmatprep.subr.bf16.mxu0 0
    %269 = vmatpush1.bf16.msra.mxu0 0
    %270 = vmatprep.subr.bf16.mxu0 0
    %271 = vmatpush1.bf16.msra.mxu0 0
    %272 = vmatprep.subr.bf16.mxu0 0
    %273 = vmatpush1.bf16.msra.mxu0 0
    %274 = vmatprep.subr.bf16.mxu0 0
    %275 = vmatpush1.bf16.msra.mxu0 0
    %276 = vmatprep.subr.bf16.mxu0 0
    %277 = vmatpush1.bf16.msra.mxu0 0
    %278 = vmatprep.subr.bf16.mxu0 0
    %279 = vmatpush1.bf16.msra.mxu0 0
    %280 = vmatprep.subr.bf16.mxu0 0
    %281 = vmatpush1.bf16.msra.mxu0 0
    %282 = vmatprep.subr.bf16.mxu0 0
    %283 = vmatpush1.bf16.msra.mxu0 0
    %284 = vmatprep.subr.bf16.mxu0 0
    %285 = vmatpush1.bf16.msra.mxu0 0
    %286 = vmatprep.mubr.bf16.mxu0 0
    %287 = vmatmul.mubr.bf16.gmra.mrb[0].mxu0 %v248
    %v288 = vpop.f32.mrb[0].mxu0
    %v289 = vadd.f32 0.0, %v288
    %v290 = vpop.f32.mrb[0].mxu0
    %v291 = vpop.f32.mrb[0].mxu0
    %v292 = vpop.f32.mrb[0].mxu0
    %293 = vdwg.mxu0
    %294 = vrot.lane.b32.xlu0 %v113, 64
    %v295 = vpop.permute.xlu0 %294
    %v297 = vsel %vm129, %v244, 0
    %v300 = vsel %vm250, %v295, 0
    %302 = vmatprep.subr.bf16.mxu0 0
    %303 = vmatpush1.bf16.msra.mxu0 %v300
    %304 = vmatprep.subr.bf16.mxu0 0
    %305 = vmatpush1.bf16.msra.mxu0 0
    %306 = vmatprep.subr.bf16.mxu0 0
    %307 = vmatpush1.bf16.msra.mxu0 0
    %308 = vmatprep.subr.bf16.mxu0 0
    %309 = vmatpush1.bf16.msra.mxu0 0
    %310 = vmatprep.subr.bf16.mxu0 0
    %311 = vmatpush1.bf16.msra.mxu0 0
    %312 = vmatprep.subr.bf16.mxu0 0
    %313 = vmatpush1.bf16.msra.mxu0 0
    %314 = vmatprep.subr.bf16.mxu0 0
    %315 = vmatpush1.bf16.msra.mxu0 0
    %316 = vmatprep.subr.bf16.mxu0 0
    %317 = vmatpush1.bf16.msra.mxu0 0
    %318 = vmatprep.subr.bf16.mxu0 0
    %319 = vmatpush1.bf16.msra.mxu0 0
    %320 = vmatprep.subr.bf16.mxu0 0
    %321 = vmatpush1.bf16.msra.mxu0 0
    %322 = vmatprep.subr.bf16.mxu0 0
    %323 = vmatpush1.bf16.msra.mxu0 0
    %324 = vmatprep.subr.bf16.mxu0 0
    %325 = vmatpush1.bf16.msra.mxu0 0
    %326 = vmatprep.subr.bf16.mxu0 0
    %327 = vmatpush1.bf16.msra.mxu0 0
    %328 = vmatprep.subr.bf16.mxu0 0
    %329 = vmatpush1.bf16.msra.mxu0 0
    %330 = vmatprep.subr.bf16.mxu0 0
    %331 = vmatpush1.bf16.msra.mxu0 0
    %332 = vmatprep.subr.bf16.mxu0 0
    %333 = vmatpush1.bf16.msra.mxu0 0
    %334 = vmatprep.mubr.bf16.mxu0 0
    %335 = vmatmul.mubr.bf16.gmra.mrb[0].mxu0 %v297
    %v336 = vpop.f32.mrb[0].mxu0
    %v337 = vadd.f32 0.0, %v336
    %v338 = vpop.f32.mrb[0].mxu0
    %v339 = vpop.f32.mrb[0].mxu0
    %v340 = vpop.f32.mrb[0].mxu0
    %341 = vdwg.mxu0
    %v342 = vrcp.pop %v239
    %v343 = vmul.f32 %v289, %v342
    %v344 = vrcp.pop %v242
    %v345 = vmul.f32 %v337, %v344
    %346 = vrot.lane.b32.xlu0 %v112, 120
    %v347 = vpop.permute.xlu0 %346
    %348 = vrot.lane.b32.xlu0 %v112, 88
    %v349 = vpop.permute.xlu0 %348
    %v351 = vsel %vm129, %v347, 0
    %v354 = vsel %vm129, %v349, 0
    %356 = vmatprep.subr.bf16.mxu0 0
    %357 = vmatpush1.bf16.xpose.msra.mxu0 %v354
    %358 = vmatprep.subr.bf16.mxu0 0
    %359 = vmatpush1.bf16.xpose.msra.mxu0 0
    %360 = vmatprep.subr.bf16.mxu0 0
    %361 = vmatpush1.bf16.xpose.msra.mxu0 0
    %362 = vmatprep.subr.bf16.mxu0 0
    %363 = vmatpush1.bf16.xpose.msra.mxu0 0
    %364 = vmatprep.subr.bf16.mxu0 0
    %365 = vmatpush1.bf16.xpose.msra.mxu0 0
    %366 = vmatprep.subr.bf16.mxu0 0
    %367 = vmatpush1.bf16.xpose.msra.mxu0 0
    %368 = vmatprep.subr.bf16.mxu0 0
    %369 = vmatpush1.bf16.xpose.msra.mxu0 0
    %370 = vmatprep.subr.bf16.mxu0 0
    %371 = vmatpush1.bf16.xpose.msra.mxu0 0
    %372 = vmatprep.subr.bf16.mxu0 0
    %373 = vmatpush1.bf16.xpose.msra.mxu0 0
    %374 = vmatprep.subr.bf16.mxu0 0
    %375 = vmatpush1.bf16.xpose.msra.mxu0 0
    %376 = vmatprep.subr.bf16.mxu0 0
    %377 = vmatpush1.bf16.xpose.msra.mxu0 0
    %378 = vmatprep.subr.bf16.mxu0 0
    %379 = vmatpush1.bf16.xpose.msra.mxu0 0
    %380 = vmatprep.subr.bf16.mxu0 0
    %381 = vmatpush1.bf16.xpose.msra.mxu0 0
    %382 = vmatprep.subr.bf16.mxu0 0
    %383 = vmatpush1.bf16.xpose.msra.mxu0 0
    %384 = vmatprep.subr.bf16.mxu0 0
    %385 = vmatpush1.bf16.xpose.msra.mxu0 0
    %386 = vmatprep.subr.bf16.mxu0 0
    %387 = vmatpush1.bf16.xpose.msra.mxu0 0
    %388 = vmatprep.mubr.bf16.mxu0 0
    %389 = vmatmul.mubr.bf16.gmra.mrb[0].mxu0 %v351
    %v390 = vpop.f32.mrb[0].mxu0
    %v391 = vadd.f32 %v119, %v390
    %v392 = vpop.f32.mrb[0].mxu0
    %v393 = vpop.f32.mrb[0].mxu0
    %v394 = vpop.f32.mrb[0].mxu0
    %395 = vdwg.mxu0
    %396 = vrot.lane.b32.xlu0 %v113, 120
    %v397 = vpop.permute.xlu0 %396
    %398 = vrot.lane.b32.xlu0 %v113, 88
    %v399 = vpop.permute.xlu0 %398
    %v401 = vsel %vm129, %v397, 0
    %v404 = vsel %vm129, %v399, 0
    %406 = vmatprep.subr.bf16.mxu0 0
    %407 = vmatpush1.bf16.xpose.msra.mxu0 %v404
    %408 = vmatprep.subr.bf16.mxu0 0
    %409 = vmatpush1.bf16.xpose.msra.mxu0 0
    %410 = vmatprep.subr.bf16.mxu0 0
    %411 = vmatpush1.bf16.xpose.msra.mxu0 0
    %412 = vmatprep.subr.bf16.mxu0 0
    %413 = vmatpush1.bf16.xpose.msra.mxu0 0
    %414 = vmatprep.subr.bf16.mxu0 0
    %415 = vmatpush1.bf16.xpose.msra.mxu0 0
    %416 = vmatprep.subr.bf16.mxu0 0
    %417 = vmatpush1.bf16.xpose.msra.mxu0 0
    %418 = vmatprep.subr.bf16.mxu0 0
    %419 = vmatpush1.bf16.xpose.msra.mxu0 0
    %420 = vmatprep.subr.bf16.mxu0 0
    %421 = vmatpush1.bf16.xpose.msra.mxu0 0
    %422 = vmatprep.subr.bf16.mxu0 0
    %423 = vmatpush1.bf16.xpose.msra.mxu0 0
    %424 = vmatprep.subr.bf16.mxu0 0
    %425 = vmatpush1.bf16.xpose.msra.mxu0 0
    %426 = vmatprep.subr.bf16.mxu0 0
    %427 = vmatpush1.bf16.xpose.msra.mxu0 0
    %428 = vmatprep.subr.bf16.mxu0 0
    %429 = vmatpush1.bf16.xpose.msra.mxu0 0
    %430 = vmatprep.subr.bf16.mxu0 0
    %431 = vmatpush1.bf16.xpose.msra.mxu0 0
    %432 = vmatprep.subr.bf16.mxu0 0
    %433 = vmatpush1.bf16.xpose.msra.mxu0 0
    %434 = vmatprep.subr.bf16.mxu0 0
    %435 = vmatpush1.bf16.xpose.msra.mxu0 0
    %436 = vmatprep.subr.bf16.mxu0 0
    %437 = vmatpush1.bf16.xpose.msra.mxu0 0
    %438 = vmatprep.mubr.bf16.mxu0 0
    %439 = vmatmul.mubr.bf16.gmra.mrb[0].mxu0 %v401
    %v440 = vpop.f32.mrb[0].mxu0
    %v441 = vadd.f32 %v123, %v440
    %v442 = vpop.f32.mrb[0].mxu0
    %v443 = vpop.f32.mrb[0].mxu0
    %v444 = vpop.f32.mrb[0].mxu0
    %445 = vdwg.mxu0
    %v446 = vsel %vm129, %v391, -inf
    %447 = vmax.xlane.f32.xlu0 %v446
    %v448 = vpop.xlane.xlu0 %447
    %v449 = vsel %vm129, %v441, -inf
    %450 = vmax.xlane.f32.xlu0 %v449
    %v451 = vpop.xlane.xlu0 %450
    %v452 = vsub.f32 %v391, %v448
    %v453 = vsub.f32 %v441, %v451
    %v454 = vmul.f32 %v452, 1.442695
    %v455 = vpow.pop %v454
    %v456 = vmul.f32 %v453, 1.442695
    %v457 = vpow.pop %v456
    %v458 = vsel %vm129, %v455, 0.0
    %459 = vadd.xlane.f32.xlu0 %v458
    %v460 = vpop.xlane.xlu0 %459
    %v461 = vsel %vm129, %v457, 0.0
    %462 = vadd.xlane.f32.xlu0 %v461
    %v463 = vpop.xlane.xlu0 %462
    %v464 = vpack.c.bf16 %v455, %v455
    %v465 = vpack.c.bf16 %v457, %v457
    %466 = vrot.lane.b32.xlu0 %v112, 56
    %v467 = vpop.permute.xlu0 %466
    %v469 = vsel %vm129, %v464, 0
    %v472 = vsel %vm250, %v467, 0
    %474 = vmatprep.subr.bf16.mxu0 0
    %475 = vmatpush1.bf16.msra.mxu0 %v472
    %476 = vmatprep.subr.bf16.mxu0 0
    %477 = vmatpush1.bf16.msra.mxu0 0
    %478 = vmatprep.subr.bf16.mxu0 0
    %479 = vmatpush1.bf16.msra.mxu0 0
    %480 = vmatprep.subr.bf16.mxu0 0
    %481 = vmatpush1.bf16.msra.mxu0 0
    %482 = vmatprep.subr.bf16.mxu0 0
    %483 = vmatpush1.bf16.msra.mxu0 0
    %484 = vmatprep.subr.bf16.mxu0 0
    %485 = vmatpush1.bf16.msra.mxu0 0
    %486 = vmatprep.subr.bf16.mxu0 0
    %487 = vmatpush1.bf16.msra.mxu0 0
    %488 = vmatprep.subr.bf16.mxu0 0
    %489 = vmatpush1.bf16.msra.mxu0 0
    %490 = vmatprep.subr.bf16.mxu0 0
    %491 = vmatpush1.bf16.msra.mxu0 0
    %492 = vmatprep.subr.bf16.mxu0 0
    %493 = vmatpush1.bf16.msra.mxu0 0
    %494 = vmatprep.subr.bf16.mxu0 0
    %495 = vmatpush1.bf16.msra.mxu0 0
    %496 = vmatprep.subr.bf16.mxu0 0
    %497 = vmatpush1.bf16.msra.mxu0 0
    %498 = vmatprep.subr.bf16.mxu0 0
    %499 = vmatpush1.bf16.msra.mxu0 0
    %500 = vmatprep.subr.bf16.mxu0 0
    %501 = vmatpush1.bf16.msra.mxu0 0
    %502 = vmatprep.subr.bf16.mxu0 0
    %503 = vmatpush1.bf16.msra.mxu0 0
    %504 = vmatprep.subr.bf16.mxu0 0
    %505 = vmatpush1.bf16.msra.mxu0 0
    %506 = vmatprep.mubr.bf16.mxu0 0
    %507 = vmatmul.mubr.bf16.gmra.mrb[0].mxu0 %v469
    %v508 = vpop.f32.mrb[0].mxu0
    %v509 = vadd.f32 0.0, %v508
    %v510 = vpop.f32.mrb[0].mxu0
    %v511 = vpop.f32.mrb[0].mxu0
    %v512 = vpop.f32.mrb[0].mxu0
    %513 = vdwg.mxu0
    %514 = vrot.lane.b32.xlu0 %v113, 56
    %v515 = vpop.permute.xlu0 %514
    %v517 = vsel %vm129, %v465, 0
    %v520 = vsel %vm250, %v515, 0
    %522 = vmatprep.subr.bf16.mxu0 0
    %523 = vmatpush1.bf16.msra.mxu0 %v520
    %524 = vmatprep.subr.bf16.mxu0 0
    %525 = vmatpush1.bf16.msra.mxu0 0
    %526 = vmatprep.subr.bf16.mxu0 0
    %527 = vmatpush1.bf16.msra.mxu0 0
    %528 = vmatprep.subr.bf16.mxu0 0
    %529 = vmatpush1.bf16.msra.mxu0 0
    %530 = vmatprep.subr.bf16.mxu0 0
    %531 = vmatpush1.bf16.msra.mxu0 0
    %532 = vmatprep.subr.bf16.mxu0 0
    %533 = vmatpush1.bf16.msra.mxu0 0
    %534 = vmatprep.subr.bf16.mxu0 0
    %535 = vmatpush1.bf16.msra.mxu0 0
    %536 = vmatprep.subr.bf16.mxu0 0
    %537 = vmatpush1.bf16.msra.mxu0 0
    %538 = vmatprep.subr.bf16.mxu0 0
    %539 = vmatpush1.bf16.msra.mxu0 0
    %540 = vmatprep.subr.bf16.mxu0 0
    %541 = vmatpush1.bf16.msra.mxu0 0
    %542 = vmatprep.subr.bf16.mxu0 0
    %543 = vmatpush1.bf16.msra.mxu0 0
    %544 = vmatprep.subr.bf16.mxu0 0
    %545 = vmatpush1.bf16.msra.mxu0 0
    %546 = vmatprep.subr.bf16.mxu0 0
    %547 = vmatpush1.bf16.msra.mxu0 0
    %548 = vmatprep.subr.bf16.mxu0 0
    %549 = vmatpush1.bf16.msra.mxu0 0
    %550 = vmatprep.subr.bf16.mxu0 0
    %551 = vmatpush1.bf16.msra.mxu0 0
    %552 = vmatprep.subr.bf16.mxu0 0
    %553 = vmatpush1.bf16.msra.mxu0 0
    %554 = vmatprep.mubr.bf16.mxu0 0
    %555 = vmatmul.mubr.bf16.gmra.mrb[0].mxu0 %v517
    %v556 = vpop.f32.mrb[0].mxu0
    %v557 = vadd.f32 0.0, %v556
    %v558 = vpop.f32.mrb[0].mxu0
    %v559 = vpop.f32.mrb[0].mxu0
    %v560 = vpop.f32.mrb[0].mxu0
    %561 = vdwg.mxu0
    %v562 = vrcp.pop %v460
    %v563 = vmul.f32 %v509, %v562
    %v564 = vrcp.pop %v463
    %v565 = vmul.f32 %v557, %v564
    %566 = vrot.lane.b32.xlu0 %v112, 112
    %v567 = vpop.permute.xlu0 %566
    %568 = vrot.lane.b32.xlu0 %v112, 80
    %v569 = vpop.permute.xlu0 %568
    %v571 = vsel %vm129, %v567, 0
    %v574 = vsel %vm129, %v569, 0
    %576 = vmatprep.subr.bf16.mxu0 0
    %577 = vmatpush1.bf16.xpose.msra.mxu0 %v574
    %578 = vmatprep.subr.bf16.mxu0 0
    %579 = vmatpush1.bf16.xpose.msra.mxu0 0
    %580 = vmatprep.subr.bf16.mxu0 0
    %581 = vmatpush1.bf16.xpose.msra.mxu0 0
    %582 = vmatprep.subr.bf16.mxu0 0
    %583 = vmatpush1.bf16.xpose.msra.mxu0 0
    %584 = vmatprep.subr.bf16.mxu0 0
    %585 = vmatpush1.bf16.xpose.msra.mxu0 0
    %586 = vmatprep.subr.bf16.mxu0 0
    %587 = vmatpush1.bf16.xpose.msra.mxu0 0
    %588 = vmatprep.subr.bf16.mxu0 0
    %589 = vmatpush1.bf16.xpose.msra.mxu0 0
    %590 = vmatprep.subr.bf16.mxu0 0
    %591 = vmatpush1.bf16.xpose.msra.mxu0 0
    %592 = vmatprep.subr.bf16.mxu0 0
    %593 = vmatpush1.bf16.xpose.msra.mxu0 0
    %594 = vmatprep.subr.bf16.mxu0 0
    %595 = vmatpush1.bf16.xpose.msra.mxu0 0
    %596 = vmatprep.subr.bf16.mxu0 0
    %597 = vmatpush1.bf16.xpose.msra.mxu0 0
    %598 = vmatprep.subr.bf16.mxu0 0
    %599 = vmatpush1.bf16.xpose.msra.mxu0 0
    %600 = vmatprep.subr.bf16.mxu0 0
    %601 = vmatpush1.bf16.xpose.msra.mxu0 0
    %602 = vmatprep.subr.bf16.mxu0 0
    %603 = vmatpush1.bf16.xpose.msra.mxu0 0
    %604 = vmatprep.subr.bf16.mxu0 0
    %605 = vmatpush1.bf16.xpose.msra.mxu0 0
    %606 = vmatprep.subr.bf16.mxu0 0
    %607 = vmatpush1.bf16.xpose.msra.mxu0 0
    %608 = vmatprep.mubr.bf16.mxu0 0
    %609 = vmatmul.mubr.bf16.gmra.mrb[0].mxu0 %v571
    %v610 = vpop.f32.mrb[0].mxu0
    %v611 = vadd.f32 %v119, %v610
    %v612 = vpop.f32.mrb[0].mxu0
    %v613 = vpop.f32.mrb[0].mxu0
    %v614 = vpop.f32.mrb[0].mxu0
    %615 = vdwg.mxu0
    %616 = vrot.lane.b32.xlu0 %v113, 112
    %v617 = vpop.permute.xlu0 %616
    %618 = vrot.lane.b32.xlu0 %v113, 80
    %v619 = vpop.permute.xlu0 %618
    %v621 = vsel %vm129, %v617, 0
    %v624 = vsel %vm129, %v619, 0
    %626 = vmatprep.subr.bf16.mxu0 0
    %627 = vmatpush1.bf16.xpose.msra.mxu0 %v624
    %628 = vmatprep.subr.bf16.mxu0 0
    %629 = vmatpush1.bf16.xpose.msra.mxu0 0
    %630 = vmatprep.subr.bf16.mxu0 0
    %631 = vmatpush1.bf16.xpose.msra.mxu0 0
    %632 = vmatprep.subr.bf16.mxu0 0
    %633 = vmatpush1.bf16.xpose.msra.mxu0 0
    %634 = vmatprep.subr.bf16.mxu0 0
    %635 = vmatpush1.bf16.xpose.msra.mxu0 0
    %636 = vmatprep.subr.bf16.mxu0 0
    %637 = vmatpush1.bf16.xpose.msra.mxu0 0
    %638 = vmatprep.subr.bf16.mxu0 0
    %639 = vmatpush1.bf16.xpose.msra.mxu0 0
    %640 = vmatprep.subr.bf16.mxu0 0
    %641 = vmatpush1.bf16.xpose.msra.mxu0 0
    %642 = vmatprep.subr.bf16.mxu0 0
    %643 = vmatpush1.bf16.xpose.msra.mxu0 0
    %644 = vmatprep.subr.bf16.mxu0 0
    %645 = vmatpush1.bf16.xpose.msra.mxu0 0
    %646 = vmatprep.subr.bf16.mxu0 0
    %647 = vmatpush1.bf16.xpose.msra.mxu0 0
    %648 = vmatprep.subr.bf16.mxu0 0
    %649 = vmatpush1.bf16.xpose.msra.mxu0 0
    %650 = vmatprep.subr.bf16.mxu0 0
    %651 = vmatpush1.bf16.xpose.msra.mxu0 0
    %652 = vmatprep.subr.bf16.mxu0 0
    %653 = vmatpush1.bf16.xpose.msra.mxu0 0
    %654 = vmatprep.subr.bf16.mxu0 0
    %655 = vmatpush1.bf16.xpose.msra.mxu0 0
    %656 = vmatprep.subr.bf16.mxu0 0
    %657 = vmatpush1.bf16.xpose.msra.mxu0 0
    %658 = vmatprep.mubr.bf16.mxu0 0
    %659 = vmatmul.mubr.bf16.gmra.mrb[0].mxu0 %v621
    %v660 = vpop.f32.mrb[0].mxu0
    %v661 = vadd.f32 %v123, %v660
    %v662 = vpop.f32.mrb[0].mxu0
    %v663 = vpop.f32.mrb[0].mxu0
    %v664 = vpop.f32.mrb[0].mxu0
    %665 = vdwg.mxu0
    %v666 = vsel %vm129, %v611, -inf
    %667 = vmax.xlane.f32.xlu0 %v666
    %v668 = vpop.xlane.xlu0 %667
    %v669 = vsel %vm129, %v661, -inf
    %670 = vmax.xlane.f32.xlu0 %v669
    %v671 = vpop.xlane.xlu0 %670
    %v672 = vsub.f32 %v611, %v668
    %v673 = vsub.f32 %v661, %v671
    %v674 = vmul.f32 %v672, 1.442695
    %v675 = vpow.pop %v674
    %v676 = vmul.f32 %v673, 1.442695
    %v677 = vpow.pop %v676
    %v678 = vsel %vm129, %v675, 0.0
    %679 = vadd.xlane.f32.xlu0 %v678
    %v680 = vpop.xlane.xlu0 %679
    %v681 = vsel %vm129, %v677, 0.0
    %682 = vadd.xlane.f32.xlu0 %v681
    %v683 = vpop.xlane.xlu0 %682
    %v684 = vpack.c.bf16 %v675, %v675
    %v685 = vpack.c.bf16 %v677, %v677
    %686 = vrot.lane.b32.xlu0 %v112, 48
    %v687 = vpop.permute.xlu0 %686
    %v689 = vsel %vm129, %v684, 0
    %v692 = vsel %vm250, %v687, 0
    %694 = vmatprep.subr.bf16.mxu0 0
    %695 = vmatpush1.bf16.msra.mxu0 %v692
    %696 = vmatprep.subr.bf16.mxu0 0
    %697 = vmatpush1.bf16.msra.mxu0 0
    %698 = vmatprep.subr.bf16.mxu0 0
    %699 = vmatpush1.bf16.msra.mxu0 0
    %700 = vmatprep.subr.bf16.mxu0 0
    %701 = vmatpush1.bf16.msra.mxu0 0
    %702 = vmatprep.subr.bf16.mxu0 0
    %703 = vmatpush1.bf16.msra.mxu0 0
    %704 = vmatprep.subr.bf16.mxu0 0
    %705 = vmatpush1.bf16.msra.mxu0 0
    %706 = vmatprep.subr.bf16.mxu0 0
    %707 = vmatpush1.bf16.msra.mxu0 0
    %708 = vmatprep.subr.bf16.mxu0 0
    %709 = vmatpush1.bf16.msra.mxu0 0
    %710 = vmatprep.subr.bf16.mxu0 0
    %711 = vmatpush1.bf16.msra.mxu0 0
    %712 = vmatprep.subr.bf16.mxu0 0
    %713 = vmatpush1.bf16.msra.mxu0 0
    %714 = vmatprep.subr.bf16.mxu0 0
    %715 = vmatpush1.bf16.msra.mxu0 0
    %716 = vmatprep.subr.bf16.mxu0 0
    %717 = vmatpush1.bf16.msra.mxu0 0
    %718 = vmatprep.subr.bf16.mxu0 0
    %719 = vmatpush1.bf16.msra.mxu0 0
    %720 = vmatprep.subr.bf16.mxu0 0
    %721 = vmatpush1.bf16.msra.mxu0 0
    %722 = vmatprep.subr.bf16.mxu0 0
    %723 = vmatpush1.bf16.msra.mxu0 0
    %724 = vmatprep.subr.bf16.mxu0 0
    %725 = vmatpush1.bf16.msra.mxu0 0
    %726 = vmatprep.mubr.bf16.mxu0 0
    %727 = vmatmul.mubr.bf16.gmra.mrb[0].mxu0 %v689
    %v728 = vpop.f32.mrb[0].mxu0
    %v729 = vadd.f32 0.0, %v728
    %v730 = vpop.f32.mrb[0].mxu0
    %v731 = vpop.f32.mrb[0].mxu0
    %v732 = vpop.f32.mrb[0].mxu0
    %733 = vdwg.mxu0
    %734 = vrot.lane.b32.xlu0 %v113, 48
    %v735 = vpop.permute.xlu0 %734
    %v737 = vsel %vm129, %v685, 0
    %v740 = vsel %vm250, %v735, 0
    %742 = vmatprep.subr.bf16.mxu0 0
    %743 = vmatpush1.bf16.msra.mxu0 %v740
    %744 = vmatprep.subr.bf16.mxu0 0
    %745 = vmatpush1.bf16.msra.mxu0 0
    %746 = vmatprep.subr.bf16.mxu0 0
    %747 = vmatpush1.bf16.msra.mxu0 0
    %748 = vmatprep.subr.bf16.mxu0 0
    %749 = vmatpush1.bf16.msra.mxu0 0
    %750 = vmatprep.subr.bf16.mxu0 0
    %751 = vmatpush1.bf16.msra.mxu0 0
    %752 = vmatprep.subr.bf16.mxu0 0
    %753 = vmatpush1.bf16.msra.mxu0 0
    %754 = vmatprep.subr.bf16.mxu0 0
    %755 = vmatpush1.bf16.msra.mxu0 0
    %756 = vmatprep.subr.bf16.mxu0 0
    %757 = vmatpush1.bf16.msra.mxu0 0
    %758 = vmatprep.subr.bf16.mxu0 0
    %759 = vmatpush1.bf16.msra.mxu0 0
    %760 = vmatprep.subr.bf16.mxu0 0
    %761 = vmatpush1.bf16.msra.mxu0 0
    %762 = vmatprep.subr.bf16.mxu0 0
    %763 = vmatpush1.bf16.msra.mxu0 0
    %764 = vmatprep.subr.bf16.mxu0 0
    %765 = vmatpush1.bf16.msra.mxu0 0
    %766 = vmatprep.subr.bf16.mxu0 0
    %767 = vmatpush1.bf16.msra.mxu0 0
    %768 = vmatprep.subr.bf16.mxu0 0
    %769 = vmatpush1.bf16.msra.mxu0 0
    %770 = vmatprep.subr.bf16.mxu0 0
    %771 = vmatpush1.bf16.msra.mxu0 0
    %772 = vmatprep.subr.bf16.mxu0 0
    %773 = vmatpush1.bf16.msra.mxu0 0
    %774 = vmatprep.mubr.bf16.mxu0 0
    %775 = vmatmul.mubr.bf16.gmra.mrb[0].mxu0 %v737
    %v776 = vpop.f32.mrb[0].mxu0
    %v777 = vadd.f32 0.0, %v776
    %v778 = vpop.f32.mrb[0].mxu0
    %v779 = vpop.f32.mrb[0].mxu0
    %v780 = vpop.f32.mrb[0].mxu0
    %781 = vdwg.mxu0
    %v782 = vrcp.pop %v680
    %v783 = vmul.f32 %v729, %v782
    %v784 = vrcp.pop %v683
    %v785 = vmul.f32 %v777, %v784
    %786 = vrot.lane.b32.xlu0 %v112, 104
    %v787 = vpop.permute.xlu0 %786
    %788 = vrot.lane.b32.xlu0 %v112, 72
    %v789 = vpop.permute.xlu0 %788
    %v791 = vsel %vm129, %v787, 0
    %v794 = vsel %vm129, %v789, 0
    %796 = vmatprep.subr.bf16.mxu0 0
    %797 = vmatpush1.bf16.xpose.msra.mxu0 %v794
    %798 = vmatprep.subr.bf16.mxu0 0
    %799 = vmatpush1.bf16.xpose.msra.mxu0 0
    %800 = vmatprep.subr.bf16.mxu0 0
    %801 = vmatpush1.bf16.xpose.msra.mxu0 0
    %802 = vmatprep.subr.bf16.mxu0 0
    %803 = vmatpush1.bf16.xpose.msra.mxu0 0
    %804 = vmatprep.subr.bf16.mxu0 0
    %805 = vmatpush1.bf16.xpose.msra.mxu0 0
    %806 = vmatprep.subr.bf16.mxu0 0
    %807 = vmatpush1.bf16.xpose.msra.mxu0 0
    %808 = vmatprep.subr.bf16.mxu0 0
    %809 = vmatpush1.bf16.xpose.msra.mxu0 0
    %810 = vmatprep.subr.bf16.mxu0 0
    %811 = vmatpush1.bf16.xpose.msra.mxu0 0
    %812 = vmatprep.subr.bf16.mxu0 0
    %813 = vmatpush1.bf16.xpose.msra.mxu0 0
    %814 = vmatprep.subr.bf16.mxu0 0
    %815 = vmatpush1.bf16.xpose.msra.mxu0 0
    %816 = vmatprep.subr.bf16.mxu0 0
    %817 = vmatpush1.bf16.xpose.msra.mxu0 0
    %818 = vmatprep.subr.bf16.mxu0 0
    %819 = vmatpush1.bf16.xpose.msra.mxu0 0
    %820 = vmatprep.subr.bf16.mxu0 0
    %821 = vmatpush1.bf16.xpose.msra.mxu0 0
    %822 = vmatprep.subr.bf16.mxu0 0
    %823 = vmatpush1.bf16.xpose.msra.mxu0 0
    %824 = vmatprep.subr.bf16.mxu0 0
    %825 = vmatpush1.bf16.xpose.msra.mxu0 0
    %826 = vmatprep.subr.bf16.mxu0 0
    %827 = vmatpush1.bf16.xpose.msra.mxu0 0
    %828 = vmatprep.mubr.bf16.mxu0 0
    %829 = vmatmul.mubr.bf16.gmra.mrb[0].mxu0 %v791
    %v830 = vpop.f32.mrb[0].mxu0
    %v831 = vadd.f32 %v119, %v830
    %v832 = vpop.f32.mrb[0].mxu0
    %v833 = vpop.f32.mrb[0].mxu0
    %v834 = vpop.f32.mrb[0].mxu0
    %835 = vdwg.mxu0
    %836 = vrot.lane.b32.xlu0 %v113, 104
    %v837 = vpop.permute.xlu0 %836
    %838 = vrot.lane.b32.xlu0 %v113, 72
    %v839 = vpop.permute.xlu0 %838
    %v841 = vsel %vm129, %v837, 0
    %v844 = vsel %vm129, %v839, 0
    %846 = vmatprep.subr.bf16.mxu0 0
    %847 = vmatpush1.bf16.xpose.msra.mxu0 %v844
    %848 = vmatprep.subr.bf16.mxu0 0
    %849 = vmatpush1.bf16.xpose.msra.mxu0 0
    %850 = vmatprep.subr.bf16.mxu0 0
    %851 = vmatpush1.bf16.xpose.msra.mxu0 0
    %852 = vmatprep.subr.bf16.mxu0 0
    %853 = vmatpush1.bf16.xpose.msra.mxu0 0
    %854 = vmatprep.subr.bf16.mxu0 0
    %855 = vmatpush1.bf16.xpose.msra.mxu0 0
    %856 = vmatprep.subr.bf16.mxu0 0
    %857 = vmatpush1.bf16.xpose.msra.mxu0 0
    %858 = vmatprep.subr.bf16.mxu0 0
    %859 = vmatpush1.bf16.xpose.msra.mxu0 0
    %860 = vmatprep.subr.bf16.mxu0 0
    %861 = vmatpush1.bf16.xpose.msra.mxu0 0
    %862 = vmatprep.subr.bf16.mxu0 0
    %863 = vmatpush1.bf16.xpose.msra.mxu0 0
    %864 = vmatprep.subr.bf16.mxu0 0
    %865 = vmatpush1.bf16.xpose.msra.mxu0 0
    %866 = vmatprep.subr.bf16.mxu0 0
    %867 = vmatpush1.bf16.xpose.msra.mxu0 0
    %868 = vmatprep.subr.bf16.mxu0 0
    %869 = vmatpush1.bf16.xpose.msra.mxu0 0
    %870 = vmatprep.subr.bf16.mxu0 0
    %871 = vmatpush1.bf16.xpose.msra.mxu0 0
    %872 = vmatprep.subr.bf16.mxu0 0
    %873 = vmatpush1.bf16.xpose.msra.mxu0 0
    %874 = vmatprep.subr.bf16.mxu0 0
    %875 = vmatpush1.bf16.xpose.msra.mxu0 0
    %876 = vmatprep.subr.bf16.mxu0 0
    %877 = vmatpush1.bf16.xpose.msra.mxu0 0
    %878 = vmatprep.mubr.bf16.mxu0 0
    %879 = vmatmul.mubr.bf16.gmra.mrb[0].mxu0 %v841
    %v880 = vpop.f32.mrb[0].mxu0
    %v881 = vadd.f32 %v123, %v880
    %v882 = vpop.f32.mrb[0].mxu0
    %v883 = vpop.f32.mrb[0].mxu0
    %v884 = vpop.f32.mrb[0].mxu0
    %885 = vdwg.mxu0
    %v886 = vsel %vm129, %v831, -inf
    %887 = vmax.xlane.f32.xlu0 %v886
    %v888 = vpop.xlane.xlu0 %887
    %v889 = vsel %vm129, %v881, -inf
    %890 = vmax.xlane.f32.xlu0 %v889
    %v891 = vpop.xlane.xlu0 %890
    %v892 = vsub.f32 %v831, %v888
    %v893 = vsub.f32 %v881, %v891
    %v894 = vmul.f32 %v892, 1.442695
    %v895 = vpow.pop %v894
    %v896 = vmul.f32 %v893, 1.442695
    %v897 = vpow.pop %v896
    %v898 = vsel %vm129, %v895, 0.0
    %899 = vadd.xlane.f32.xlu0 %v898
    %v900 = vpop.xlane.xlu0 %899
    %v901 = vsel %vm129, %v897, 0.0
    %902 = vadd.xlane.f32.xlu0 %v901
    %v903 = vpop.xlane.xlu0 %902
    %v904 = vpack.c.bf16 %v895, %v895
    %v905 = vpack.c.bf16 %v897, %v897
    %906 = vrot.lane.b32.xlu0 %v112, 40
    %v907 = vpop.permute.xlu0 %906
    %v909 = vsel %vm129, %v904, 0
    %v912 = vsel %vm250, %v907, 0
    %914 = vmatprep.subr.bf16.mxu0 0
    %915 = vmatpush1.bf16.msra.mxu0 %v912
    %916 = vmatprep.subr.bf16.mxu0 0
    %917 = vmatpush1.bf16.msra.mxu0 0
    %918 = vmatprep.subr.bf16.mxu0 0
    %919 = vmatpush1.bf16.msra.mxu0 0
    %920 = vmatprep.subr.bf16.mxu0 0
    %921 = vmatpush1.bf16.msra.mxu0 0
    %922 = vmatprep.subr.bf16.mxu0 0
    %923 = vmatpush1.bf16.msra.mxu0 0
    %924 = vmatprep.subr.bf16.mxu0 0
    %925 = vmatpush1.bf16.msra.mxu0 0
    %926 = vmatprep.subr.bf16.mxu0 0
    %927 = vmatpush1.bf16.msra.mxu0 0
    %928 = vmatprep.subr.bf16.mxu0 0
    %929 = vmatpush1.bf16.msra.mxu0 0
    %930 = vmatprep.subr.bf16.mxu0 0
    %931 = vmatpush1.bf16.msra.mxu0 0
    %932 = vmatprep.subr.bf16.mxu0 0
    %933 = vmatpush1.bf16.msra.mxu0 0
    %934 = vmatprep.subr.bf16.mxu0 0
    %935 = vmatpush1.bf16.msra.mxu0 0
    %936 = vmatprep.subr.bf16.mxu0 0
    %937 = vmatpush1.bf16.msra.mxu0 0
    %938 = vmatprep.subr.bf16.mxu0 0
    %939 = vmatpush1.bf16.msra.mxu0 0
    %940 = vmatprep.subr.bf16.mxu0 0
    %941 = vmatpush1.bf16.msra.mxu0 0
    %942 = vmatprep.subr.bf16.mxu0 0
    %943 = vmatpush1.bf16.msra.mxu0 0
    %944 = vmatprep.subr.bf16.mxu0 0
    %945 = vmatpush1.bf16.msra.mxu0 0
    %946 = vmatprep.mubr.bf16.mxu0 0
    %947 = vmatmul.mubr.bf16.gmra.mrb[0].mxu0 %v909
    %v948 = vpop.f32.mrb[0].mxu0
    %v949 = vadd.f32 0.0, %v948
    %v950 = vpop.f32.mrb[0].mxu0
    %v951 = vpop.f32.mrb[0].mxu0
    %v952 = vpop.f32.mrb[0].mxu0
    %953 = vdwg.mxu0
    %954 = vrot.lane.b32.xlu0 %v113, 40
    %v955 = vpop.permute.xlu0 %954
    %v957 = vsel %vm129, %v905, 0
    %v960 = vsel %vm250, %v955, 0
    %962 = vmatprep.subr.bf16.mxu0 0
    %963 = vmatpush1.bf16.msra.mxu0 %v960
    %964 = vmatprep.subr.bf16.mxu0 0
    %965 = vmatpush1.bf16.msra.mxu0 0
    %966 = vmatprep.subr.bf16.mxu0 0
    %967 = vmatpush1.bf16.msra.mxu0 0
    %968 = vmatprep.subr.bf16.mxu0 0
    %969 = vmatpush1.bf16.msra.mxu0 0
    %970 = vmatprep.subr.bf16.mxu0 0
    %971 = vmatpush1.bf16.msra.mxu0 0
    %972 = vmatprep.subr.bf16.mxu0 0
    %973 = vmatpush1.bf16.msra.mxu0 0
    %974 = vmatprep.subr.bf16.mxu0 0
    %975 = vmatpush1.bf16.msra.mxu0 0
    %976 = vmatprep.subr.bf16.mxu0 0
    %977 = vmatpush1.bf16.msra.mxu0 0
    %978 = vmatprep.subr.bf16.mxu0 0
    %979 = vmatpush1.bf16.msra.mxu0 0
    %980 = vmatprep.subr.bf16.mxu0 0
    %981 = vmatpush1.bf16.msra.mxu0 0
    %982 = vmatprep.subr.bf16.mxu0 0
    %983 = vmatpush1.bf16.msra.mxu0 0
    %984 = vmatprep.subr.bf16.mxu0 0
    %985 = vmatpush1.bf16.msra.mxu0 0
    %986 = vmatprep.subr.bf16.mxu0 0
    %987 = vmatpush1.bf16.msra.mxu0 0
    %988 = vmatprep.subr.bf16.mxu0 0
    %989 = vmatpush1.bf16.msra.mxu0 0
    %990 = vmatprep.subr.bf16.mxu0 0
    %991 = vmatpush1.bf16.msra.mxu0 0
    %992 = vmatprep.subr.bf16.mxu0 0
    %993 = vmatpush1.bf16.msra.mxu0 0
    %994 = vmatprep.mubr.bf16.mxu0 0
    %995 = vmatmul.mubr.bf16.gmra.mrb[0].mxu0 %v957
    %v996 = vpop.f32.mrb[0].mxu0
    %v997 = vadd.f32 0.0, %v996
    %v998 = vpop.f32.mrb[0].mxu0
    %v999 = vpop.f32.mrb[0].mxu0
    %v1000 = vpop.f32.mrb[0].mxu0
    %1001 = vdwg.mxu0
    %v1002 = vrcp.pop %v900
    %v1003 = vmul.f32 %v949, %v1002
    %v1004 = vrcp.pop %v903
    %v1005 = vmul.f32 %v997, %v1004
    %1008 = vrot.lane.b32.xlu0 %v563, 8
    %v1009 = vpop.permute.xlu0 %1008
    %1010 = vrot.lane.b32.xlu0 %v565, 8
    %v1011 = vpop.permute.xlu0 %1010
    %1016 = vrot.lane.b32.xlu0 %v783, 16
    %v1017 = vpop.permute.xlu0 %1016
    %1018 = vrot.lane.b32.xlu0 %v785, 16
    %v1019 = vpop.permute.xlu0 %1018
    %1024 = vrot.lane.b32.xlu0 %v1003, 24
    %v1025 = vpop.permute.xlu0 %1024
    %1026 = vrot.lane.b32.xlu0 %v1005, 24
    %v1027 = vpop.permute.xlu0 %1026
    %v1030 = vsel %vm129, %v343, %v1009
    %v1031 = vsel %vm129, %v345, %v1011
    %vm1032 = vcmask 130048
    %v1033 = vsel %vm1032, %v1030, %v1017
    %v1034 = vsel %vm1032, %v1031, %v1019
    %vm1035 = vcmask 195584
    %v1036 = vsel %vm1035, %v1033, %v1025
    %v1037 = vsel %vm1035, %v1034, %v1027
    %v1038 = vpack.c.bf16 %v1037, %v1036
    %v1039 = vld [vmem:[%s4] sm:$0xf]
    %v1040 = vld [vmem:[%s4 + $0x4] sm:$0xf]
    %v1041 = vld [vmem:[%s4 + $0x8] sm:$0xf]
    %v1042 = vld [vmem:[%s4 + $0xc] sm:$0xf]
    %v1047 = vunpack.c.l.b16 %v1039
    %v1048 = vunpack.c.l.b16 %v1040
    %v1049 = vunpack.c.l.b16 %v1041
    %v1050 = vunpack.c.l.b16 %v1042
    %v1051 = vpack.c.b16 %v1048, %v1047
    %v1052 = vpack.c.b16 %v1050, %v1049
    %v1056 = vsel %vm65, %v1038, 0
    %1058 = vmatprep.subr.bf16.mxu0 0
    %1059 = vmatpush1.bf16.msra.mxu0 %v1051
    %1060 = vmatprep.subr.bf16.mxu0 0
    %1061 = vmatpush1.bf16.msra.mxu0 %v1052
    %1062 = vmatprep.subr.bf16.mxu0 0
    %1063 = vmatpush1.bf16.msra.mxu0 0
    %1064 = vmatprep.subr.bf16.mxu0 0
    %1065 = vmatpush1.bf16.msra.mxu0 0
    %1066 = vmatprep.subr.bf16.mxu0 0
    %1067 = vmatpush1.bf16.msra.mxu0 0
    %1068 = vmatprep.subr.bf16.mxu0 0
    %1069 = vmatpush1.bf16.msra.mxu0 0
    %1070 = vmatprep.subr.bf16.mxu0 0
    %1071 = vmatpush1.bf16.msra.mxu0 0
    %1072 = vmatprep.subr.bf16.mxu0 0
    %1073 = vmatpush1.bf16.msra.mxu0 0
    %1074 = vmatprep.subr.bf16.mxu0 0
    %1075 = vmatpush1.bf16.msra.mxu0 0
    %1076 = vmatprep.subr.bf16.mxu0 0
    %1077 = vmatpush1.bf16.msra.mxu0 0
    %1078 = vmatprep.subr.bf16.mxu0 0
    %1079 = vmatpush1.bf16.msra.mxu0 0
    %1080 = vmatprep.subr.bf16.mxu0 0
    %1081 = vmatpush1.bf16.msra.mxu0 0
    %1082 = vmatprep.subr.bf16.mxu0 0
    %1083 = vmatpush1.bf16.msra.mxu0 0
    %1084 = vmatprep.subr.bf16.mxu0 0
    %1085 = vmatpush1.bf16.msra.mxu0 0
    %1086 = vmatprep.subr.bf16.mxu0 0
    %1087 = vmatpush1.bf16.msra.mxu0 0
    %1088 = vmatprep.subr.bf16.mxu0 0
    %1089 = vmatpush1.bf16.msra.mxu0 0
    %1090 = vmatprep.mubr.bf16.mxu0 0
    %1091 = vmatmul.mubr.bf16.gmra.mrb[0].mxu0 %v1056
    %v1092 = vpop.f32.mrb[0].mxu0
    %v1093 = vadd.f32 0.0, %v1092
    %v1094 = vpop.f32.mrb[0].mxu0
    %v1095 = vpop.f32.mrb[0].mxu0
    %v1096 = vadd.f32 0.0, %v1095
    %v1097 = vpop.f32.mrb[0].mxu0
    %1098 = vdwg.mxu0
    %v1099 = vadd.f32 %v46, %v1093
    %v1100 = vadd.f32 %v47, %v1096
    %v1101 = vsel %vm65, %v1099, 0.0
    %v1102 = vsel %vm65, %v1100, 0.0
    %v1103 = vadd.f32 %v1101, %v1102
    %v1104 = vrot.slane %v1103, 4
    %v1105 = vadd.f32 %v1103, %v1104
    %v1106 = vrot.slane %v1105, 2
    %v1107 = vadd.f32 %v1105, %v1106
    %v1108 = vrot.slane %v1107, 1
    %v1109 = vadd.f32 %v1107, %v1108
    %v1110 = vrcp.pop 16.0
    %v1111 = vmul.f32 %v1109, %v1110
    %v1112 = vsub.f32 %v1099, %v1111
    %v1113 = vsub.f32 %v1100, %v1111
    %v1114 = vmul.f32 %v1112, %v1112
    %v1115 = vmul.f32 %v1113, %v1113
    %v1116 = vsel %vm65, %v1114, 0.0
    %v1117 = vsel %vm65, %v1115, 0.0
    %v1118 = vadd.f32 %v1116, %v1117
    %v1119 = vrot.slane %v1118, 4
    %v1120 = vadd.f32 %v1118, %v1119
    %v1121 = vrot.slane %v1120, 2
    %v1122 = vadd.f32 %v1120, %v1121
    %v1123 = vrot.slane %v1122, 1
    %v1124 = vadd.f32 %v1122, %v1123
    %v1125 = vmul.f32 %v1124, %v1110
    %v1126 = vadd.f32 %v1125, 1e-05
    %v1127 = vrsqrt.pop %v1126
    %v1128 = vmul.f32 %v1112, %v1127
    %v1129 = vmul.f32 %v1113, %v1127
    %v1130 = vld [vmem:[%s5] sm:$0x1]
    %v1132 = vlaneseq
    %v1133 = vshrl.u32 %v1132, 7
    %v1134 = vsub.s32 0, %v1133
    %v1135 = vrot.slane %v1130, %v1134
    %v1137 = vmul.f32 %v1128, %v1135
    %v1138 = vmul.f32 %v1129, %v1135
    %v1139 = vld [vmem:[%s6] sm:$0x1]
    %v1141 = vlaneseq
    %v1142 = vshrl.u32 %v1141, 7
    %v1143 = vsub.s32 0, %v1142
    %v1144 = vrot.slane %v1139, %v1143
    %v1146 = vadd.f32 %v1137, %v1144
    %v1147 = vadd.f32 %v1138, %v1144
    %v1148 = vpack.c.bf16 %v1147, %v1146
    %v1149 = vld [vmem:[%s7] sm:$0xf]
    %v1150 = vld [vmem:[%s7 + $0x4] sm:$0xf]
    %v1151 = vld [vmem:[%s7 + $0x8] sm:$0xf]
    %v1152 = vld [vmem:[%s7 + $0xc] sm:$0xf]
    %v1153 = vld [vmem:[%s8] sm:$0x1]
    %v1155 = vlaneseq
    %v1156 = vshrl.u32 %v1155, 7
    %v1157 = vsub.s32 0, %v1156
    %v1158 = vrot.slane %v1153, %v1157
    %v1164 = vunpack.c.l.b16 %v1149
    %v1165 = vunpack.c.l.b16 %v1150
    %v1166 = vunpack.c.l.b16 %v1151
    %v1167 = vunpack.c.l.b16 %v1152
    %v1168 = vpack.c.b16 %v1165, %v1164
    %v1169 = vpack.c.b16 %v1167, %v1166
    %v1173 = vsel %vm65, %v1148, 0
    %1175 = vmatprep.subr.bf16.mxu0 0
    %1176 = vmatpush1.bf16.msra.mxu0 %v1168
    %1177 = vmatprep.subr.bf16.mxu0 0
    %1178 = vmatpush1.bf16.msra.mxu0 %v1169
    %1179 = vmatprep.subr.bf16.mxu0 0
    %1180 = vmatpush1.bf16.msra.mxu0 0
    %1181 = vmatprep.subr.bf16.mxu0 0
    %1182 = vmatpush1.bf16.msra.mxu0 0
    %1183 = vmatprep.subr.bf16.mxu0 0
    %1184 = vmatpush1.bf16.msra.mxu0 0
    %1185 = vmatprep.subr.bf16.mxu0 0
    %1186 = vmatpush1.bf16.msra.mxu0 0
    %1187 = vmatprep.subr.bf16.mxu0 0
    %1188 = vmatpush1.bf16.msra.mxu0 0
    %1189 = vmatprep.subr.bf16.mxu0 0
    %1190 = vmatpush1.bf16.msra.mxu0 0
    %1191 = vmatprep.subr.bf16.mxu0 0
    %1192 = vmatpush1.bf16.msra.mxu0 0
    %1193 = vmatprep.subr.bf16.mxu0 0
    %1194 = vmatpush1.bf16.msra.mxu0 0
    %1195 = vmatprep.subr.bf16.mxu0 0
    %1196 = vmatpush1.bf16.msra.mxu0 0
    %1197 = vmatprep.subr.bf16.mxu0 0
    %1198 = vmatpush1.bf16.msra.mxu0 0
    %1199 = vmatprep.subr.bf16.mxu0 0
    %1200 = vmatpush1.bf16.msra.mxu0 0
    %1201 = vmatprep.subr.bf16.mxu0 0
    %1202 = vmatpush1.bf16.msra.mxu0 0
    %1203 = vmatprep.subr.bf16.mxu0 0
    %1204 = vmatpush1.bf16.msra.mxu0 0
    %1205 = vmatprep.subr.bf16.mxu0 0
    %1206 = vmatpush1.bf16.msra.mxu0 0
    %1207 = vmatprep.mubr.bf16.mxu0 0
    %1208 = vmatmul.mubr.bf16.gmra.mrb[0].mxu0 %v1173
    %v1209 = vpop.f32.mrb[0].mxu0
    %v1210 = vadd.f32 %v1158, %v1209
    %v1211 = vpop.f32.mrb[0].mxu0
    %v1212 = vpop.f32.mrb[0].mxu0
    %v1213 = vadd.f32 %v1158, %v1212
    %v1214 = vpop.f32.mrb[0].mxu0
    %1215 = vdwg.mxu0
    %v1216 = vmax.f32 %v1210, 0.0
    %v1217 = vmax.f32 %v1213, 0.0
    %v1218 = vpack.c.bf16 %v1217, %v1216
    %v1219 = vld [vmem:[%s9] sm:$0xf]
    %v1220 = vld [vmem:[%s9 + $0x4] sm:$0xf]
    %v1221 = vld [vmem:[%s9 + $0x8] sm:$0xf]
    %v1222 = vld [vmem:[%s9 + $0xc] sm:$0xf]
    %v1223 = vld [vmem:[%s9 + $0x10] sm:$0xf]
    %v1224 = vld [vmem:[%s9 + $0x14] sm:$0xf]
    %v1225 = vld [vmem:[%s9 + $0x18] sm:$0xf]
    %v1226 = vld [vmem:[%s9 + $0x1c] sm:$0xf]
    %v1227 = vld [vmem:[%s10] sm:$0x1]
    %v1229 = vlaneseq
    %v1230 = vshrl.u32 %v1229, 7
    %v1231 = vsub.s32 0, %v1230
    %v1232 = vrot.slane %v1227, %v1231
    %v1242 = vunpack.c.l.b16 %v1219
    %v1243 = vunpack.c.l.b16 %v1220
    %v1244 = vunpack.c.l.b16 %v1221
    %v1245 = vunpack.c.l.b16 %v1222
    %v1246 = vunpack.c.l.b16 %v1223
    %v1247 = vunpack.c.l.b16 %v1224
    %v1248 = vunpack.c.l.b16 %v1225
    %v1249 = vunpack.c.l.b16 %v1226
    %v1250 = vpack.c.b16 %v1243, %v1242
    %v1251 = vpack.c.b16 %v1245, %v1244
    %v1252 = vpack.c.b16 %v1247, %v1246
    %v1253 = vpack.c.b16 %v1249, %v1248
    %vm1258 = vcmask 523264
    %v1260 = vsel %vm1258, %v1218, 0
    %1262 = vmatprep.subr.bf16.mxu0 0
    %1263 = vmatpush1.bf16.msra.mxu0 %v1250
    %1264 = vmatprep.subr.bf16.mxu0 0
    %1265 = vmatpush1.bf16.msra.mxu0 %v1251
    %1266 = vmatprep.subr.bf16.mxu0 0
    %1267 = vmatpush1.bf16.msra.mxu0 %v1252
    %1268 = vmatprep.subr.bf16.mxu0 0
    %1269 = vmatpush1.bf16.msra.mxu0 %v1253
    %1270 = vmatprep.subr.bf16.mxu0 0
    %1271 = vmatpush1.bf16.msra.mxu0 0
    %1272 = vmatprep.subr.bf16.mxu0 0
    %1273 = vmatpush1.bf16.msra.mxu0 0
    %1274 = vmatprep.subr.bf16.mxu0 0
    %1275 = vmatpush1.bf16.msra.mxu0 0
    %1276 = vmatprep.subr.bf16.mxu0 0
    %1277 = vmatpush1.bf16.msra.mxu0 0
    %1278 = vmatprep.subr.bf16.mxu0 0
    %1279 = vmatpush1.bf16.msra.mxu0 0
    %1280 = vmatprep.subr.bf16.mxu0 0
    %1281 = vmatpush1.bf16.msra.mxu0 0
    %1282 = vmatprep.subr.bf16.mxu0 0
    %1283 = vmatpush1.bf16.msra.mxu0 0
    %1284 = vmatprep.subr.bf16.mxu0 0
    %1285 = vmatpush1.bf16.msra.mxu0 0
    %1286 = vmatprep.subr.bf16.mxu0 0
    %1287 = vmatpush1.bf16.msra.mxu0 0
    %1288 = vmatprep.subr.bf16.mxu0 0
    %1289 = vmatpush1.bf16.msra.mxu0 0
    %1290 = vmatprep.subr.bf16.mxu0 0
    %1291 = vmatpush1.bf16.msra.mxu0 0
    %1292 = vmatprep.subr.bf16.mxu0 0
    %1293 = vmatpush1.bf16.msra.mxu0 0
    %1294 = vmatprep.mubr.bf16.mxu0 0
    %1295 = vmatmul.mubr.bf16.gmra.mrb[0].mxu0 %v1260
    %v1296 = vpop.f32.mrb[0].mxu0
    %v1297 = vadd.f32 %v1232, %v1296
    %v1298 = vpop.f32.mrb[0].mxu0
    %v1299 = vpop.f32.mrb[0].mxu0
    %v1300 = vadd.f32 %v1232, %v1299
    %v1301 = vpop.f32.mrb[0].mxu0
    %1302 = vdwg.mxu0
    %v1303 = vadd.f32 %v1146, %v1297
    %v1304 = vadd.f32 %v1147, %v1300
    %v1305 = vsel %vm65, %v1303, 0.0
    %v1306 = vsel %vm65, %v1304, 0.0
    %v1307 = vadd.f32 %v1305, %v1306
    %v1308 = vrot.slane %v1307, 4
    %v1309 = vadd.f32 %v1307, %v1308
    %v1310 = vrot.slane %v1309, 2
    %v1311 = vadd.f32 %v1309, %v1310
    %v1312 = vrot.slane %v1311, 1
    %v1313 = vadd.f32 %v1311, %v1312
    %v1314 = vmul.f32 %v1313, %v1110
    %v1315 = vsub.f32 %v1303, %v1314
    %v1316 = vsub.f32 %v1304, %v1314
    %v1317 = vmul.f32 %v1315, %v1315
    %v1318 = vmul.f32 %v1316, %v1316
    %v1319 = vsel %vm65, %v1317, 0.0
    %v1320 = vsel %vm65, %v1318, 0.0
    %v1321 = vadd.f32 %v1319, %v1320
    %v1322 = vrot.slane %v1321, 4
    %v1323 = vadd.f32 %v1321, %v1322
    %v1324 = vrot.slane %v1323, 2
    %v1325 = vadd.f32 %v1323, %v1324
    %v1326 = vrot.slane %v1325, 1
    %v1327 = vadd.f32 %v1325, %v1326
    %v1328 = vmul.f32 %v1327, %v1110
    %v1329 = vadd.f32 %v1328, 1e-05
    %v1330 = vrsqrt.pop %v1329
    %v1331 = vmul.f32 %v1315, %v1330
    %v1332 = vmul.f32 %v1316, %v1330
    %v1333 = vld [vmem:[%s11] sm:$0x1]
    %v1335 = vlaneseq
    %v1336 = vshrl.u32 %v1335, 7
    %v1337 = vsub.s32 0, %v1336
    %v1338 = vrot.slane %v1333, %v1337
    %v1340 = vmul.f32 %v1331, %v1338
    %v1341 = vmul.f32 %v1332, %v1338
    %v1342 = vld [vmem:[%s12] sm:$0x1]
    %v1344 = vlaneseq
    %v1345 = vshrl.u32 %v1344, 7
    %v1346 = vsub.s32 0, %v1345
    %v1347 = vrot.slane %v1342, %v1346
    %v1349 = vadd.f32 %v1340, %v1347
    %v1350 = vadd.f32 %v1341, %v1347
    %v1351 = vld [vmem:[%s2] sm:$0xff]
    %v1352 = vld [vmem:[%s2 + $0x8] sm:$0xff]
    %1354 = vset.pattern.permute.xlu0 0
    %1355 = vperm.xlu0 %1354, %v1351
    %v1356 = vpop.permute.xlu0 %1355
    %1359 = vset.pattern.permute.xlu0 0
    %1360 = vperm.xlu0 %1359, %v1352
    %v1361 = vpop.permute.xlu0 %1360
    %v1363 = vmul.f32 %v1349, %v1356
    %v1364 = vmul.f32 %v1350, %v1361
    %1365 = vst.msk [vmem:[#allocation2] sm:$0xff] %vm65, %v1363
    %1366 = vst.msk [vmem:[#allocation2 + $0x8] sm:$0xff] %vm65, %v1364
    // Predicated region
    $region54: #{transformer_encoder_layer.1} parent=1 // pred_check
      _
    $region55: #{transformer_encoder_layer.1} parent=1 // pred_check_branch
      %1368 = sbr.rel (0) target = $region57
    $region56: #{transformer_encoder_layer.1} parent=1 // pred_region
      %s1370 = ssub.s32 256, 256
      %1371 = vsyncadd [#allocation3], %s1370
      %s1372 = sshll.u32 [#allocation2], 4
      %s1373 = int_to_ptr.vmem [resolvable:$true] %s1372
      %1378 = dma.vmem_to_hbm [thread:$0]  %s1373, 256, %s13, [#allocation3], 128, 128, 8
    $region57: #{transformer_encoder_layer.1} parent=1 // pred_fallthru
      _
    // Predicated region
    $region58: #{transformer_encoder_layer.1} parent=1 // pred_check
      _
    $region59: #{transformer_encoder_layer.1} parent=1 // pred_check_branch
      %1380 = sbr.rel (0) target = $region61
    $region60: #{transformer_encoder_layer.1} parent=1 // pred_region
      %1381 = dma.done [#allocation3], 256
    $region61: #{transformer_encoder_layer.1} parent=1 // pred_fallthru
      _
    %1382 = vsyncpa [#allocation3], 1

</llo_original>
